<compile_context>
chip_gen: v6e
topology: v6e:2x2x1
jax: 0.10.0
libtpu: 0.0.40
codegen_flags: <defaults>
</compile_context>

<pallas_src>
import jax
import jax.numpy as jnp
from jax.experimental import pallas as pl


# ------------------------------------------------------------------ kernel

def _text_head_kernel(x_ref, v_ref, bcat_ref, s_ref, wp_ref, bp_ref,
                      words_ref, sent_ref):
    """Fused word-conv head + sentence projection, whole batch in one MXU pass.

    x_ref    : (M, 768)     word embeddings, M = bs*T (batch flattened into M)
    v_ref    : (768, 4*3F)  bf16 packed conv weights; per shift k the 3F block is
                            [w2[k] | w3[k] | w4[k]] with zero slabs where k >= K
    bcat_ref : (1, 3F)      f32 packed conv biases [b2|b3|b4]
    s_ref    : (bs, 768)    sentence embedding
    wp_ref   : (768, P)     bf16 projection weight (already transposed)
    bp_ref   : (1, P)       f32 projection bias
    words_ref: (bs, L, F)   L = T-2, L2-normalized word code (transposed in wrapper)
    sent_ref : (bs, P)      L2-normalized sentence projection
    """
    M, _ = x_ref.shape
    bs, L, F_ = words_ref.shape
    T = M // bs
    C = 3 * F_

    # One lane-dense MXU dot over the whole flattened batch (bf16 in, f32 acc):
    #   y[r, k*C:(k+1)*C] = x[r] @ V_k
    x = x_ref[...].astype(jnp.bfloat16)
    y = jnp.dot(x, v_ref[...], preferred_element_type=jnp.float32)        # (M, 4C)

    # Shift-and-add on the small result instead of staging a padded copy of x:
    #   o[r] = sum_k y[r+k, k*C:(k+1)*C]
    # Rows past the end read explicit zeros; cross-batch / tail contamination only
    # ever lands in weight slabs that are zero-packed or in rows masked below
    # (ReLU outputs are >= 0, so masked-to-zero rows never win the max).
    yp = jnp.concatenate([y, jnp.zeros((8, 4 * C), jnp.float32)], axis=0)  # (M+8, 4C)
    o = y[:, 0:C]                                                          # k = 0
    for k in range(1, 4):
        blk = yp[:, k * C:(k + 1) * C]                                     # (M+8, C)
        o = o + blk[k:k + M, :]                                            # shifted rows
    o = jnp.maximum(o + bcat_ref[...], 0.0)                                # bias + ReLU

    # get_each_word_feature:
    #   code[t]   = max(o2[t], o3[t], o4[t])  for t <  L-2
    #   code[L-2] = max(o2, o3)
    #   code[L-1] = o2
    # Masks hoisted out of the (tiny) per-batch epilogue loop.
    row = jax.lax.broadcasted_iota(jnp.int32, (L, F_), 0)
    m3 = row < L - 1
    m4 = row < L - 2

    for b in range(bs):
        ob = o[b * T:b * T + L, :]                                         # (L, 3F)
        o2 = ob[:, :F_]
        o3 = jnp.where(m3, ob[:, F_:2 * F_], 0.0)
        o4 = jnp.where(m4, ob[:, 2 * F_:], 0.0)
        code = jnp.maximum(o2, jnp.maximum(o3, o4))                        # (L, F)
        # F.normalize(p=2, dim=-1), eps=1e-12  (rsqrt on the EUP)
        inv = jax.lax.rsqrt(
            jnp.maximum(jnp.sum(code * code, axis=-1, keepdims=True), 1e-24))
        words_ref[b] = (code * inv).astype(words_ref.dtype)

    # Fused ProjectionHead (eval): Linear(768 -> P) then L2-normalize.
    s = s_ref[...].astype(jnp.bfloat16)
    ys = jnp.dot(s, wp_ref[...], preferred_element_type=jnp.float32) + bp_ref[...]
    inv_s = jax.lax.rsqrt(jnp.maximum(jnp.sum(ys * ys, axis=-1, keepdims=True), 1e-24))
    sent_ref[...] = (ys * inv_s).astype(sent_ref.dtype)


# ------------------------------------------------------------------ wrapper

def pack_params(params):
    """One-time (outside jit) packing into a bf16, lane-dense (768, 4*3F) slab."""
    D, F_ = params["w2"].shape[1], params["w2"].shape[-1]
    z = jnp.zeros((D, F_), jnp.float32)
    w2, w3, w4 = params["w2"], params["w3"], params["w4"]
    slabs = [
        jnp.concatenate([w2[0], w3[0], w4[0]], axis=-1),
        jnp.concatenate([w2[1], w3[1], w4[1]], axis=-1),
        jnp.concatenate([z,     w3[2], w4[2]], axis=-1),
        jnp.concatenate([z,     z,     w4[3]], axis=-1),
    ]
    v = jnp.concatenate(slabs, axis=-1).astype(jnp.bfloat16)    # (768, 12F) = (768, 384)
    bcat = jnp.concatenate([params["b2"], params["b3"], params["b4"]], axis=-1)  # (1, 3F)
    return {"v": v, "bcat": bcat,
            "wp": params["wp"].astype(jnp.bfloat16), "bp": params["bp"]}


def text_head_forward(words_emb, sent_emb, packed):
    bs, T, D = words_emb.shape
    C = packed["bcat"].shape[-1]
    F_ = C // 3
    P = packed["wp"].shape[-1]
    L = T - 2

    # Free reshape (merges contiguous leading dims): batch rows become the matmul M dim.
    xf = words_emb.reshape(bs * T, D)

    code, sent_out = pl.pallas_call(
        _text_head_kernel,
        out_shape=(jax.ShapeDtypeStruct((bs, L, F_), jnp.float32),
                   jax.ShapeDtypeStruct((bs, P), jnp.float32)),
    )(xf, packed["v"], packed["bcat"], sent_emb, packed["wp"], packed["bp"])

    # PyTorch's words_emb.transpose(1, 2): tiny (bs, L, F) -> (bs, F, L) glue op.
    words_out = jnp.transpose(code, (0, 2, 1))
    return words_out, sent_out


# ------------------------------------------------------------------ reference (pure JAX, f32)

def _reference_forward(words_emb, sent_emb, params):
    bs, T, D = words_emb.shape
    outs = []
    for K, wk, bk in [(2, params["w2"], params["b2"]),
                      (3, params["w3"], params["b3"]),
                      (4, params["w4"], params["b4"])]:
        Lk = T - K + 1
        o = jnp.zeros((bs, Lk, wk.shape[-1]), jnp.float32)
        for k in range(K):
            o = o + jnp.einsum("btd,df->btf", words_emb[:, k:k + Lk], wk[k])
        outs.append(jnp.maximum(o + bk, 0.0))
    a, b_, c = outs
    seq = T - 4
    rows = [jnp.maximum(jnp.maximum(a[:, t], b_[:, t]), c[:, t]) for t in range(seq)]
    rows.append(jnp.maximum(a[:, seq], b_[:, seq]))
    rows.append(a[:, seq + 1])
    code = jnp.stack(rows, axis=1)
    code = code / jnp.maximum(jnp.linalg.norm(code, axis=2, keepdims=True), 1e-12)
    words_out = jnp.transpose(code, (0, 2, 1))

    s = sent_emb @ params["wp"] + params["bp"]
    s = s / jnp.maximum(jnp.linalg.norm(s, axis=-1, keepdims=True), 1e-12)
    return words_out, s


# ------------------------------------------------------------------ main

if __name__ == "__main__":
    import numpy as np

    bs = 2
    T = 12            # args.bert_words_num
    D = 768           # BERT hidden size (fixed by the module)
    F_ = 32           # args.gl_text_dim (conv out channels == projection dim)

    key = jax.random.PRNGKey(0)
    ks = jax.random.split(key, 10)

    params = {
        "w2": 0.02 * jax.random.normal(ks[0], (2, D, F_), jnp.float32),
        "w3": 0.02 * jax.random.normal(ks[1], (3, D, F_), jnp.float32),
        "w4": 0.02 * jax.random.normal(ks[2], (4, D, F_), jnp.float32),
        "b2": 0.02 * jax.random.normal(ks[3], (1, F_), jnp.float32),
        "b3": 0.02 * jax.random.normal(ks[4], (1, F_), jnp.float32),
        "b4": 0.02 * jax.random.normal(ks[5], (1, F_), jnp.float32),
        "wp": 0.02 * jax.random.normal(ks[6], (D, F_), jnp.float32),  # Linear weight^T
        "bp": 0.02 * jax.random.normal(ks[7], (1, F_), jnp.float32),
    }

    words_emb = jax.random.normal(ks[8], (bs, T, D), jnp.float32)
    sent_emb = jax.random.normal(ks[9], (bs, D), jnp.float32)

    packed = pack_params(params)   # done once, off the per-call critical path

    fwd = jax.jit(text_head_forward)
    words_out, sent_out = fwd(words_emb, sent_emb, packed)
    jax.block_until_ready((words_out, sent_out))

    ref_words, ref_sent = _reference_forward(words_emb, sent_emb, params)
    # bf16 matmul operands with f32 accumulation: tolerance relaxed per review.
    np.testing.assert_allclose(np.asarray(words_out), np.asarray(ref_words),
                               rtol=1e-2, atol=1e-2)
    np.testing.assert_allclose(np.asarray(sent_out), np.asarray(ref_sent),
                               rtol=1e-2, atol=1e-2)
    assert words_out.shape == (bs, F_, T - 2)
    assert sent_out.shape == (bs, F_)

    print("KERNEL_OK")
</pallas_src>

<mosaic_0001>
module attributes {stable_mosaic.version = 11 : i64} {
  func.func @_text_head_kernel(%arg0: memref<24x768xf32, #tpu.memory_space<vmem>>, %arg1: memref<768x384xbf16, #tpu.memory_space<vmem>>, %arg2: memref<1x96xf32, #tpu.memory_space<vmem>>, %arg3: memref<2x768xf32, #tpu.memory_space<vmem>>, %arg4: memref<768x32xbf16, #tpu.memory_space<vmem>>, %arg5: memref<1x32xf32, #tpu.memory_space<vmem>>, %arg6: memref<2x10x32xf32, #tpu.memory_space<vmem>>, %arg7: memref<2x32xf32, #tpu.memory_space<vmem>>) attributes {dimension_semantics = [], scalar_prefetch = 0 : i64, scratch_operands = 0 : i64, tpu.core_type = #tpu.core_type<tc>} {
    %c0 = arith.constant 0 : index
    %c0_0 = arith.constant 0 : index
    %0 = vector.load %arg0[%c0, %c0_0] : memref<24x768xf32, #tpu.memory_space<vmem>>, vector<24x768xf32>
    %1 = arith.truncf %0 : vector<24x768xf32> to vector<24x768xbf16>
    %c0_1 = arith.constant 0 : index
    %c0_2 = arith.constant 0 : index
    %2 = vector.load %arg1[%c0_1, %c0_2] : memref<768x384xbf16, #tpu.memory_space<vmem>>, vector<768x384xbf16>
    %cst = arith.constant dense<0.000000e+00> : vector<24x384xf32>
    %3 = tpu.matmul %1, %2, %cst {dimension_numbers = #tpu.dot_dimension_numbers<[1], [0], [0], [1], [0, 0, 1, 1], [], []>} : vector<24x768xbf16>, vector<768x384xbf16>, vector<24x384xf32> -> vector<24x384xf32>
    %cst_3 = arith.constant 0.000000e+00 : f32
    %4 = vector.broadcast %cst_3 : f32 to vector<8x384xf32>
    %5 = tpu.concatenate %3, %4 in 0 : vector<24x384xf32>, vector<8x384xf32> -> vector<32x384xf32>
    %6 = vector.extract_strided_slice %3 {offsets = [0, 0], sizes = [24, 96], strides = [1, 1]} : vector<24x384xf32> to vector<24x96xf32>
    %7 = vector.extract_strided_slice %5 {offsets = [0, 96], sizes = [32, 96], strides = [1, 1]} : vector<32x384xf32> to vector<32x96xf32>
    %8 = vector.extract_strided_slice %7 {offsets = [1, 0], sizes = [24, 96], strides = [1, 1]} : vector<32x96xf32> to vector<24x96xf32>
    %9 = arith.addf %6, %8 : vector<24x96xf32>
    %10 = vector.extract_strided_slice %5 {offsets = [0, 192], sizes = [32, 96], strides = [1, 1]} : vector<32x384xf32> to vector<32x96xf32>
    %11 = vector.extract_strided_slice %10 {offsets = [2, 0], sizes = [24, 96], strides = [1, 1]} : vector<32x96xf32> to vector<24x96xf32>
    %12 = arith.addf %9, %11 : vector<24x96xf32>
    %13 = vector.extract_strided_slice %5 {offsets = [0, 288], sizes = [32, 96], strides = [1, 1]} : vector<32x384xf32> to vector<32x96xf32>
    %14 = vector.extract_strided_slice %13 {offsets = [3, 0], sizes = [24, 96], strides = [1, 1]} : vector<32x96xf32> to vector<24x96xf32>
    %15 = arith.addf %12, %14 : vector<24x96xf32>
    %c0_4 = arith.constant 0 : index
    %c0_5 = arith.constant 0 : index
    %16 = vector.load %arg2[%c0_4, %c0_5] : memref<1x96xf32, #tpu.memory_space<vmem>>, vector<1x96xf32>
    %17 = vector.broadcast %16 : vector<1x96xf32> to vector<24x96xf32>
    %18 = arith.addf %15, %17 : vector<24x96xf32>
    %cst_6 = arith.constant 0.000000e+00 : f32
    %19 = vector.broadcast %cst_6 : f32 to vector<24x96xf32>
    %20 = arith.maximumf %18, %19 : vector<24x96xf32>
    %21 = tpu.iota {dimensions = array<i32: 0>} : vector<10x32xi32>
    %c9_i32 = arith.constant 9 : i32
    %22 = vector.broadcast %c9_i32 : i32 to vector<10x32xi32>
    %23 = arith.cmpi slt, %21, %22 : vector<10x32xi32>
    %c8_i32 = arith.constant 8 : i32
    %24 = vector.broadcast %c8_i32 : i32 to vector<10x32xi32>
    %25 = arith.cmpi slt, %21, %24 : vector<10x32xi32>
    %26 = vector.extract_strided_slice %20 {offsets = [0, 0], sizes = [10, 96], strides = [1, 1]} : vector<24x96xf32> to vector<10x96xf32>
    %27 = vector.extract_strided_slice %26 {offsets = [0, 0], sizes = [10, 32], strides = [1, 1]} : vector<10x96xf32> to vector<10x32xf32>
    %28 = vector.extract_strided_slice %26 {offsets = [0, 32], sizes = [10, 32], strides = [1, 1]} : vector<10x96xf32> to vector<10x32xf32>
    %cst_7 = arith.constant 0.000000e+00 : f32
    %29 = vector.broadcast %cst_7 : f32 to vector<10x32xf32>
    %30 = arith.select %23, %28, %29 : vector<10x32xi1>, vector<10x32xf32>
    %31 = vector.extract_strided_slice %26 {offsets = [0, 64], sizes = [10, 32], strides = [1, 1]} : vector<10x96xf32> to vector<10x32xf32>
    %cst_8 = arith.constant 0.000000e+00 : f32
    %32 = vector.broadcast %cst_8 : f32 to vector<10x32xf32>
    %33 = arith.select %25, %31, %32 : vector<10x32xi1>, vector<10x32xf32>
    %34 = arith.maximumf %30, %33 : vector<10x32xf32>
    %35 = arith.maximumf %27, %34 : vector<10x32xf32>
    %36 = arith.mulf %35, %35 : vector<10x32xf32>
    %cst_9 = arith.constant dense<0.000000e+00> : vector<10xf32>
    %37 = vector.multi_reduction <add>, %36, %cst_9 [1] : vector<10x32xf32> to vector<10xf32>
    %38 = vector.shape_cast %37 : vector<10xf32> to vector<10x1xf32>
    %cst_10 = arith.constant 1.000000e-24 : f32
    %39 = vector.broadcast %cst_10 : f32 to vector<10x1xf32>
    %40 = arith.maximumf %38, %39 : vector<10x1xf32>
    %41 = math.rsqrt %40 : vector<10x1xf32>
    %42 = vector.broadcast %41 : vector<10x1xf32> to vector<10x32xf32>
    %43 = arith.mulf %35, %42 : vector<10x32xf32>
    %c0_11 = arith.constant 0 : index
    %c0_12 = arith.constant 0 : index
    %c0_13 = arith.constant 0 : index
    %44 = vector.load %arg6[%c0_11, %c0_12, %c0_13] : memref<2x10x32xf32, #tpu.memory_space<vmem>>, vector<1x10x32xf32>
    %45 = vector.shape_cast %44 : vector<1x10x32xf32> to vector<10x32xf32>
    %46 = vector.shape_cast %43 : vector<10x32xf32> to vector<1x10x32xf32>
    tpu.vector_store %arg6[%c0_11, %c0_12, %c0_13], %46 {strides = array<i32>} : memref<2x10x32xf32, #tpu.memory_space<vmem>>, vector<1x10x32xf32>,
    %47 = vector.extract_strided_slice %20 {offsets = [12, 0], sizes = [10, 96], strides = [1, 1]} : vector<24x96xf32> to vector<10x96xf32>
    %48 = vector.extract_strided_slice %47 {offsets = [0, 0], sizes = [10, 32], strides = [1, 1]} : vector<10x96xf32> to vector<10x32xf32>
    %49 = vector.extract_strided_slice %47 {offsets = [0, 32], sizes = [10, 32], strides = [1, 1]} : vector<10x96xf32> to vector<10x32xf32>
    %cst_14 = arith.constant 0.000000e+00 : f32
    %50 = vector.broadcast %cst_14 : f32 to vector<10x32xf32>
    %51 = arith.select %23, %49, %50 : vector<10x32xi1>, vector<10x32xf32>
    %52 = vector.extract_strided_slice %47 {offsets = [0, 64], sizes = [10, 32], strides = [1, 1]} : vector<10x96xf32> to vector<10x32xf32>
    %cst_15 = arith.constant 0.000000e+00 : f32
    %53 = vector.broadcast %cst_15 : f32 to vector<10x32xf32>
    %54 = arith.select %25, %52, %53 : vector<10x32xi1>, vector<10x32xf32>
    %55 = arith.maximumf %51, %54 : vector<10x32xf32>
    %56 = arith.maximumf %48, %55 : vector<10x32xf32>
    %57 = arith.mulf %56, %56 : vector<10x32xf32>
    %cst_16 = arith.constant dense<0.000000e+00> : vector<10xf32>
    %58 = vector.multi_reduction <add>, %57, %cst_16 [1] : vector<10x32xf32> to vector<10xf32>
    %59 = vector.shape_cast %58 : vector<10xf32> to vector<10x1xf32>
    %cst_17 = arith.constant 1.000000e-24 : f32
    %60 = vector.broadcast %cst_17 : f32 to vector<10x1xf32>
    %61 = arith.maximumf %59, %60 : vector<10x1xf32>
    %62 = math.rsqrt %61 : vector<10x1xf32>
    %63 = vector.broadcast %62 : vector<10x1xf32> to vector<10x32xf32>
    %64 = arith.mulf %56, %63 : vector<10x32xf32>
    %c1 = arith.constant 1 : index
    %c0_18 = arith.constant 0 : index
    %c0_19 = arith.constant 0 : index
    %65 = vector.load %arg6[%c1, %c0_18, %c0_19] : memref<2x10x32xf32, #tpu.memory_space<vmem>>, vector<1x10x32xf32>
    %66 = vector.shape_cast %65 : vector<1x10x32xf32> to vector<10x32xf32>
    %67 = vector.shape_cast %64 : vector<10x32xf32> to vector<1x10x32xf32>
    tpu.vector_store %arg6[%c1, %c0_18, %c0_19], %67 {strides = array<i32>} : memref<2x10x32xf32, #tpu.memory_space<vmem>>, vector<1x10x32xf32>,
    %c0_20 = arith.constant 0 : index
    %c0_21 = arith.constant 0 : index
    %68 = vector.load %arg3[%c0_20, %c0_21] : memref<2x768xf32, #tpu.memory_space<vmem>>, vector<2x768xf32>
    %69 = arith.truncf %68 : vector<2x768xf32> to vector<2x768xbf16>
    %c0_22 = arith.constant 0 : index
    %c0_23 = arith.constant 0 : index
    %70 = vector.load %arg4[%c0_22, %c0_23] : memref<768x32xbf16, #tpu.memory_space<vmem>>, vector<768x32xbf16>
    %cst_24 = arith.constant dense<0.000000e+00> : vector<2x32xf32>
    %71 = tpu.matmul %69, %70, %cst_24 {dimension_numbers = #tpu.dot_dimension_numbers<[1], [0], [0], [1], [0, 0, 1, 1], [], []>} : vector<2x768xbf16>, vector<768x32xbf16>, vector<2x32xf32> -> vector<2x32xf32>
    %c0_25 = arith.constant 0 : index
    %c0_26 = arith.constant 0 : index
    %72 = vector.load %arg5[%c0_25, %c0_26] : memref<1x32xf32, #tpu.memory_space<vmem>>, vector<1x32xf32>
    %73 = vector.broadcast %72 : vector<1x32xf32> to vector<2x32xf32>
    %74 = arith.addf %71, %73 : vector<2x32xf32>
    %75 = arith.mulf %74, %74 : vector<2x32xf32>
    %cst_27 = arith.constant dense<0.000000e+00> : vector<2xf32>
    %76 = vector.multi_reduction <add>, %75, %cst_27 [1] : vector<2x32xf32> to vector<2xf32>
    %77 = vector.shape_cast %76 : vector<2xf32> to vector<2x1xf32>
    %cst_28 = arith.constant 1.000000e-24 : f32
    %78 = vector.broadcast %cst_28 : f32 to vector<2x1xf32>
    %79 = arith.maximumf %77, %78 : vector<2x1xf32>
    %80 = math.rsqrt %79 : vector<2x1xf32>
    %81 = vector.broadcast %80 : vector<2x1xf32> to vector<2x32xf32>
    %82 = arith.mulf %74, %81 : vector<2x32xf32>
    %c0_29 = arith.constant 0 : index
    %c0_30 = arith.constant 0 : index
    %83 = vector.load %arg7[%c0_29, %c0_30] : memref<2x32xf32, #tpu.memory_space<vmem>>, vector<2x32xf32>
    tpu.vector_store %arg7[%c0_29, %c0_30], %82 {strides = array<i32>} : memref<2x32xf32, #tpu.memory_space<vmem>>, vector<2x32xf32>,
    return
  }
}

</mosaic_0001>

<llo_original>
// kernel: text_head_forward.1
$region0: #{text_head_forward.1}
  #allocation0 [shape = 'u32[]', space=smem, size = 0x4, offset = 0x4, fixed_abs, tag = 'smem constant byte address 0x4 - core index']
  #allocation1 [shape = 'u32[144,128]{1,0:T(1,128)}', space=vmem, size = 0x12000, scoped, tag = 'internal scratch']
  %s0 = inlined_call_operand.vmem [shape: f32[24,768], index: 0, kind: input, shape index: {}]
  %s1 = inlined_call_operand.vmem [shape: bf16[768,384], index: 1, kind: input, shape index: {}]
  %s2 = inlined_call_operand.vmem [shape: f32[1,96], index: 2, kind: input, shape index: {}]
  %s3 = inlined_call_operand.hbm [shape: f32[2,768], index: 3, kind: input, shape index: {}]
  %s4 = inlined_call_operand.vmem [shape: bf16[768,32], index: 4, kind: input, shape index: {}]
  %s5 = inlined_call_operand.vmem [shape: f32[1,32], index: 5, kind: input, shape index: {}]
  %s6 = inlined_call_operand.vmem [shape: f32[2,10,32], index: 6, kind: output, shape index: {0}]
  %s7 = inlined_call_operand.hbm [shape: f32[2,32], index: 7, kind: output, shape index: {1}]
  %8 = xla_tuple %s6, %s7
  %s9 = sld [smem:[#allocation0]]
  $region46: #{text_head_forward.1} parent=0
    _
  %s11 = ssub.s32 1, %s9
  %s12 = scalar_select 0, %s11, %s9
  $region1: #{text_head_forward.1} parent=0
    #allocation2 [shape = 'u8[6144]{0}', space=vmem, size = 0x1800, scoped, tag = 'input window, operand 3, single buffered']
    #allocation3 [shape = 's32[1]{0}', space=sflag, size = 0x4, scoped, tag = 'scoped memory for text_head_forward.1']
    #allocation4 [shape = 's32[1]{0}', space=sflag, size = 0x4, scoped, tag = 'scoped memory for text_head_forward.1']
    #allocation5 [shape = 'u8[1024]{0}', space=vmem, size = 0x400, scoped, tag = 'output window, operand 1, single buffered']
    %13 = vsyncpa [#allocation3], 0
    %14 = vsyncpa [#allocation4], 0
    // Predicated region
    $region2: #{text_head_forward.1} parent=1 // pred_check
      _
    $region3: #{text_head_forward.1} parent=1 // pred_check_branch
      %16 = sbr.rel (0) target = $region5
    $region4: #{text_head_forward.1} parent=1 // pred_region
      _
    $region5: #{text_head_forward.1} parent=1 // pred_fallthru
      _
    // Predicated region
    $region6: #{text_head_forward.1} parent=1 // pred_check
      _
    $region7: #{text_head_forward.1} parent=1 // pred_check_branch
      %18 = sbr.rel (0) target = $region9
    $region8: #{text_head_forward.1} parent=1 // pred_region
      _
    $region9: #{text_head_forward.1} parent=1 // pred_fallthru
      _
    // Predicated region
    $region10: #{text_head_forward.1} parent=1 // pred_check
      _
    $region11: #{text_head_forward.1} parent=1 // pred_check_branch
      %20 = sbr.rel (0) target = $region13
    $region12: #{text_head_forward.1} parent=1 // pred_region
      _
    $region13: #{text_head_forward.1} parent=1 // pred_fallthru
      _
    // Predicated region
    $region14: #{text_head_forward.1} parent=1 // pred_check
      _
    $region15: #{text_head_forward.1} parent=1 // pred_check_branch
      %22 = sbr.rel (0) target = $region17
    $region16: #{text_head_forward.1} parent=1 // pred_region
      %s24 = ssub.s32 192, 192
      %25 = vsyncadd [#allocation3], %s24
      %s27 = sshll.u32 [#allocation2], 4
      %s28 = int_to_ptr.vmem [resolvable:$true] %s27
      %30 = dma.hbm_to_vmem [thread:$0]  %s3, 192, %s28, [#allocation3]
    $region17: #{text_head_forward.1} parent=1 // pred_fallthru
      _
    // Predicated region
    $region18: #{text_head_forward.1} parent=1 // pred_check
      _
    $region19: #{text_head_forward.1} parent=1 // pred_check_branch
      %32 = sbr.rel (0) target = $region21
    $region20: #{text_head_forward.1} parent=1 // pred_region
      _
    $region21: #{text_head_forward.1} parent=1 // pred_fallthru
      _
    // Predicated region
    $region22: #{text_head_forward.1} parent=1 // pred_check
      _
    $region23: #{text_head_forward.1} parent=1 // pred_check_branch
      %34 = sbr.rel (0) target = $region25
    $region24: #{text_head_forward.1} parent=1 // pred_region
      _
    $region25: #{text_head_forward.1} parent=1 // pred_fallthru
      _
    // Predicated region
    $region26: #{text_head_forward.1} parent=1 // pred_check
      _
    $region27: #{text_head_forward.1} parent=1 // pred_check_branch
      %36 = sbr.rel (0) target = $region29
    $region28: #{text_head_forward.1} parent=1 // pred_region
      %37 = dma.done [#allocation3], 192
    $region29: #{text_head_forward.1} parent=1 // pred_fallthru
      _
    %v39 = vld [vmem:[%s0] sm:$0xff]
    %v40 = vld [vmem:[%s0 + $0x8] sm:$0xff]
    %v41 = vld [vmem:[%s0 + $0x10] sm:$0xff]
    %v42 = vld [vmem:[%s0 + $0x18] sm:$0xff]
    %v43 = vld [vmem:[%s0 + $0x20] sm:$0xff]
    %v44 = vld [vmem:[%s0 + $0x28] sm:$0xff]
    %v45 = vld [vmem:[%s0 + $0x30] sm:$0xff]
    %v46 = vld [vmem:[%s0 + $0x38] sm:$0xff]
    %v47 = vld [vmem:[%s0 + $0x40] sm:$0xff]
    %v48 = vld [vmem:[%s0 + $0x48] sm:$0xff]
    %v49 = vld [vmem:[%s0 + $0x50] sm:$0xff]
    %v50 = vld [vmem:[%s0 + $0x58] sm:$0xff]
    %v51 = vld [vmem:[%s0 + $0x60] sm:$0xff]
    %v52 = vld [vmem:[%s0 + $0x68] sm:$0xff]
    %v53 = vld [vmem:[%s0 + $0x70] sm:$0xff]
    %v54 = vld [vmem:[%s0 + $0x78] sm:$0xff]
    %v55 = vld [vmem:[%s0 + $0x80] sm:$0xff]
    %v56 = vld [vmem:[%s0 + $0x88] sm:$0xff]
    %v57 = vpack.c.bf16 %v45, %v39
    %v58 = vpack.c.bf16 %v46, %v40
    %v59 = vpack.c.bf16 %v47, %v41
    %v60 = vpack.c.bf16 %v48, %v42
    %v61 = vpack.c.bf16 %v49, %v43
    %v62 = vpack.c.bf16 %v50, %v44
    %v63 = vpack.c.bf16 %v51, %v51
    %v64 = vpack.c.bf16 %v52, %v52
    %v65 = vpack.c.bf16 %v53, %v53
    %v66 = vpack.c.bf16 %v54, %v54
    %v67 = vpack.c.bf16 %v55, %v55
    %v68 = vpack.c.bf16 %v56, %v56
    %v69 = vld [vmem:[%s1] sm:$0xff]
    %v70 = vld [vmem:[%s1 + $0x8] sm:$0xf]
    %v71 = vld [vmem:[%s1 + $0xc] sm:$0xff]
    %v72 = vld [vmem:[%s1 + $0x14] sm:$0xf]
    %v73 = vld [vmem:[%s1 + $0x18] sm:$0xff]
    %v74 = vld [vmem:[%s1 + $0x20] sm:$0xf]
    %v75 = vld [vmem:[%s1 + $0x24] sm:$0xff]
    %v76 = vld [vmem:[%s1 + $0x2c] sm:$0xf]
    %v77 = vld [vmem:[%s1 + $0x30] sm:$0xff]
    %v78 = vld [vmem:[%s1 + $0x38] sm:$0xf]
    %v79 = vld [vmem:[%s1 + $0x3c] sm:$0xff]
    %v80 = vld [vmem:[%s1 + $0x44] sm:$0xf]
    %v81 = vld [vmem:[%s1 + $0x48] sm:$0xff]
    %v82 = vld [vmem:[%s1 + $0x50] sm:$0xf]
    %v83 = vld [vmem:[%s1 + $0x54] sm:$0xff]
    %v84 = vld [vmem:[%s1 + $0x5c] sm:$0xf]
    %v85 = vld [vmem:[%s1 + $0x60] sm:$0xff]
    %v86 = vld [vmem:[%s1 + $0x68] sm:$0xf]
    %v87 = vld [vmem:[%s1 + $0x6c] sm:$0xff]
    %v88 = vld [vmem:[%s1 + $0x74] sm:$0xf]
    %v89 = vld [vmem:[%s1 + $0x78] sm:$0xff]
    %v90 = vld [vmem:[%s1 + $0x80] sm:$0xf]
    %v91 = vld [vmem:[%s1 + $0x84] sm:$0xff]
    %v92 = vld [vmem:[%s1 + $0x8c] sm:$0xf]
    %v93 = vld [vmem:[%s1 + $0x90] sm:$0xff]
    %v94 = vld [vmem:[%s1 + $0x98] sm:$0xf]
    %v95 = vld [vmem:[%s1 + $0x9c] sm:$0xff]
    %v96 = vld [vmem:[%s1 + $0xa4] sm:$0xf]
    %v97 = vld [vmem:[%s1 + $0xa8] sm:$0xff]
    %v98 = vld [vmem:[%s1 + $0xb0] sm:$0xf]
    %v99 = vld [vmem:[%s1 + $0xb4] sm:$0xff]
    %v100 = vld [vmem:[%s1 + $0xbc] sm:$0xf]
    %v101 = vld [vmem:[%s1 + $0xc0] sm:$0xff]
    %v102 = vld [vmem:[%s1 + $0xc8] sm:$0xf]
    %v103 = vld [vmem:[%s1 + $0xcc] sm:$0xff]
    %v104 = vld [vmem:[%s1 + $0xd4] sm:$0xf]
    %v105 = vld [vmem:[%s1 + $0xd8] sm:$0xff]
    %v106 = vld [vmem:[%s1 + $0xe0] sm:$0xf]
    %v107 = vld [vmem:[%s1 + $0xe4] sm:$0xff]
    %v108 = vld [vmem:[%s1 + $0xec] sm:$0xf]
    %v109 = vld [vmem:[%s1 + $0xf0] sm:$0xff]
    %v110 = vld [vmem:[%s1 + $0xf8] sm:$0xf]
    %v111 = vld [vmem:[%s1 + $0xfc] sm:$0xff]
    %v112 = vld [vmem:[%s1 + $0x104] sm:$0xf]
    %v113 = vld [vmem:[%s1 + $0x108] sm:$0xff]
    %v114 = vld [vmem:[%s1 + $0x110] sm:$0xf]
    %v115 = vld [vmem:[%s1 + $0x114] sm:$0xff]
    %v116 = vld [vmem:[%s1 + $0x11c] sm:$0xf]
    %v117 = vld [vmem:[%s1 + $0x120] sm:$0xff]
    %v118 = vld [vmem:[%s1 + $0x128] sm:$0xf]
    %v119 = vld [vmem:[%s1 + $0x12c] sm:$0xff]
    %v120 = vld [vmem:[%s1 + $0x134] sm:$0xf]
    %v121 = vld [vmem:[%s1 + $0x138] sm:$0xff]
    %v122 = vld [vmem:[%s1 + $0x140] sm:$0xf]
    %v123 = vld [vmem:[%s1 + $0x144] sm:$0xff]
    %v124 = vld [vmem:[%s1 + $0x14c] sm:$0xf]
    %v125 = vld [vmem:[%s1 + $0x150] sm:$0xff]
    %v126 = vld [vmem:[%s1 + $0x158] sm:$0xf]
    %v127 = vld [vmem:[%s1 + $0x15c] sm:$0xff]
    %v128 = vld [vmem:[%s1 + $0x164] sm:$0xf]
    %v129 = vld [vmem:[%s1 + $0x168] sm:$0xff]
    %v130 = vld [vmem:[%s1 + $0x170] sm:$0xf]
    %v131 = vld [vmem:[%s1 + $0x174] sm:$0xff]
    %v132 = vld [vmem:[%s1 + $0x17c] sm:$0xf]
    %v133 = vld [vmem:[%s1 + $0x180] sm:$0xff]
    %v134 = vld [vmem:[%s1 + $0x188] sm:$0xf]
    %v135 = vld [vmem:[%s1 + $0x18c] sm:$0xff]
    %v136 = vld [vmem:[%s1 + $0x194] sm:$0xf]
    %v137 = vld [vmem:[%s1 + $0x198] sm:$0xff]
    %v138 = vld [vmem:[%s1 + $0x1a0] sm:$0xf]
    %v139 = vld [vmem:[%s1 + $0x1a4] sm:$0xff]
    %v140 = vld [vmem:[%s1 + $0x1ac] sm:$0xf]
    %v141 = vld [vmem:[%s1 + $0x1b0] sm:$0xff]
    %v142 = vld [vmem:[%s1 + $0x1b8] sm:$0xf]
    %v143 = vld [vmem:[%s1 + $0x1bc] sm:$0xff]
    %v144 = vld [vmem:[%s1 + $0x1c4] sm:$0xf]
    %v145 = vld [vmem:[%s1 + $0x1c8] sm:$0xff]
    %v146 = vld [vmem:[%s1 + $0x1d0] sm:$0xf]
    %v147 = vld [vmem:[%s1 + $0x1d4] sm:$0xff]
    %v148 = vld [vmem:[%s1 + $0x1dc] sm:$0xf]
    %v149 = vld [vmem:[%s1 + $0x1e0] sm:$0xff]
    %v150 = vld [vmem:[%s1 + $0x1e8] sm:$0xf]
    %v151 = vld [vmem:[%s1 + $0x1ec] sm:$0xff]
    %v152 = vld [vmem:[%s1 + $0x1f4] sm:$0xf]
    %v153 = vld [vmem:[%s1 + $0x1f8] sm:$0xff]
    %v154 = vld [vmem:[%s1 + $0x200] sm:$0xf]
    %v155 = vld [vmem:[%s1 + $0x204] sm:$0xff]
    %v156 = vld [vmem:[%s1 + $0x20c] sm:$0xf]
    %v157 = vld [vmem:[%s1 + $0x210] sm:$0xff]
    %v158 = vld [vmem:[%s1 + $0x218] sm:$0xf]
    %v159 = vld [vmem:[%s1 + $0x21c] sm:$0xff]
    %v160 = vld [vmem:[%s1 + $0x224] sm:$0xf]
    %v161 = vld [vmem:[%s1 + $0x228] sm:$0xff]
    %v162 = vld [vmem:[%s1 + $0x230] sm:$0xf]
    %v163 = vld [vmem:[%s1 + $0x234] sm:$0xff]
    %v164 = vld [vmem:[%s1 + $0x23c] sm:$0xf]
    %v165 = vld [vmem:[%s1 + $0x240] sm:$0xff]
    %v166 = vld [vmem:[%s1 + $0x248] sm:$0xf]
    %v167 = vld [vmem:[%s1 + $0x24c] sm:$0xff]
    %v168 = vld [vmem:[%s1 + $0x254] sm:$0xf]
    %v169 = vld [vmem:[%s1 + $0x258] sm:$0xff]
    %v170 = vld [vmem:[%s1 + $0x260] sm:$0xf]
    %v171 = vld [vmem:[%s1 + $0x264] sm:$0xff]
    %v172 = vld [vmem:[%s1 + $0x26c] sm:$0xf]
    %v173 = vld [vmem:[%s1 + $0x270] sm:$0xff]
    %v174 = vld [vmem:[%s1 + $0x278] sm:$0xf]
    %v175 = vld [vmem:[%s1 + $0x27c] sm:$0xff]
    %v176 = vld [vmem:[%s1 + $0x284] sm:$0xf]
    %v177 = vld [vmem:[%s1 + $0x288] sm:$0xff]
    %v178 = vld [vmem:[%s1 + $0x290] sm:$0xf]
    %v179 = vld [vmem:[%s1 + $0x294] sm:$0xff]
    %v180 = vld [vmem:[%s1 + $0x29c] sm:$0xf]
    %v181 = vld [vmem:[%s1 + $0x2a0] sm:$0xff]
    %v182 = vld [vmem:[%s1 + $0x2a8] sm:$0xf]
    %v183 = vld [vmem:[%s1 + $0x2ac] sm:$0xff]
    %v184 = vld [vmem:[%s1 + $0x2b4] sm:$0xf]
    %v185 = vld [vmem:[%s1 + $0x2b8] sm:$0xff]
    %v186 = vld [vmem:[%s1 + $0x2c0] sm:$0xf]
    %v187 = vld [vmem:[%s1 + $0x2c4] sm:$0xff]
    %v188 = vld [vmem:[%s1 + $0x2cc] sm:$0xf]
    %v189 = vld [vmem:[%s1 + $0x2d0] sm:$0xff]
    %v190 = vld [vmem:[%s1 + $0x2d8] sm:$0xf]
    %v191 = vld [vmem:[%s1 + $0x2dc] sm:$0xff]
    %v192 = vld [vmem:[%s1 + $0x2e4] sm:$0xf]
    %v193 = vld [vmem:[%s1 + $0x2e8] sm:$0xff]
    %v194 = vld [vmem:[%s1 + $0x2f0] sm:$0xf]
    %v195 = vld [vmem:[%s1 + $0x2f4] sm:$0xff]
    %v196 = vld [vmem:[%s1 + $0x2fc] sm:$0xf]
    %v197 = vld [vmem:[%s1 + $0x300] sm:$0xff]
    %v198 = vld [vmem:[%s1 + $0x308] sm:$0xf]
    %v199 = vld [vmem:[%s1 + $0x30c] sm:$0xff]
    %v200 = vld [vmem:[%s1 + $0x314] sm:$0xf]
    %v201 = vld [vmem:[%s1 + $0x318] sm:$0xff]
    %v202 = vld [vmem:[%s1 + $0x320] sm:$0xf]
    %v203 = vld [vmem:[%s1 + $0x324] sm:$0xff]
    %v204 = vld [vmem:[%s1 + $0x32c] sm:$0xf]
    %v205 = vld [vmem:[%s1 + $0x330] sm:$0xff]
    %v206 = vld [vmem:[%s1 + $0x338] sm:$0xf]
    %v207 = vld [vmem:[%s1 + $0x33c] sm:$0xff]
    %v208 = vld [vmem:[%s1 + $0x344] sm:$0xf]
    %v209 = vld [vmem:[%s1 + $0x348] sm:$0xff]
    %v210 = vld [vmem:[%s1 + $0x350] sm:$0xf]
    %v211 = vld [vmem:[%s1 + $0x354] sm:$0xff]
    %v212 = vld [vmem:[%s1 + $0x35c] sm:$0xf]
    %v213 = vld [vmem:[%s1 + $0x360] sm:$0xff]
    %v214 = vld [vmem:[%s1 + $0x368] sm:$0xf]
    %v215 = vld [vmem:[%s1 + $0x36c] sm:$0xff]
    %v216 = vld [vmem:[%s1 + $0x374] sm:$0xf]
    %v217 = vld [vmem:[%s1 + $0x378] sm:$0xff]
    %v218 = vld [vmem:[%s1 + $0x380] sm:$0xf]
    %v219 = vld [vmem:[%s1 + $0x384] sm:$0xff]
    %v220 = vld [vmem:[%s1 + $0x38c] sm:$0xf]
    %v221 = vld [vmem:[%s1 + $0x390] sm:$0xff]
    %v222 = vld [vmem:[%s1 + $0x398] sm:$0xf]
    %v223 = vld [vmem:[%s1 + $0x39c] sm:$0xff]
    %v224 = vld [vmem:[%s1 + $0x3a4] sm:$0xf]
    %v225 = vld [vmem:[%s1 + $0x3a8] sm:$0xff]
    %v226 = vld [vmem:[%s1 + $0x3b0] sm:$0xf]
    %v227 = vld [vmem:[%s1 + $0x3b4] sm:$0xff]
    %v228 = vld [vmem:[%s1 + $0x3bc] sm:$0xf]
    %v229 = vld [vmem:[%s1 + $0x3c0] sm:$0xff]
    %v230 = vld [vmem:[%s1 + $0x3c8] sm:$0xf]
    %v231 = vld [vmem:[%s1 + $0x3cc] sm:$0xff]
    %v232 = vld [vmem:[%s1 + $0x3d4] sm:$0xf]
    %v233 = vld [vmem:[%s1 + $0x3d8] sm:$0xff]
    %v234 = vld [vmem:[%s1 + $0x3e0] sm:$0xf]
    %v235 = vld [vmem:[%s1 + $0x3e4] sm:$0xff]
    %v236 = vld [vmem:[%s1 + $0x3ec] sm:$0xf]
    %v237 = vld [vmem:[%s1 + $0x3f0] sm:$0xff]
    %v238 = vld [vmem:[%s1 + $0x3f8] sm:$0xf]
    %v239 = vld [vmem:[%s1 + $0x3fc] sm:$0xff]
    %v240 = vld [vmem:[%s1 + $0x404] sm:$0xf]
    %v241 = vld [vmem:[%s1 + $0x408] sm:$0xff]
    %v242 = vld [vmem:[%s1 + $0x410] sm:$0xf]
    %v243 = vld [vmem:[%s1 + $0x414] sm:$0xff]
    %v244 = vld [vmem:[%s1 + $0x41c] sm:$0xf]
    %v245 = vld [vmem:[%s1 + $0x420] sm:$0xff]
    %v246 = vld [vmem:[%s1 + $0x428] sm:$0xf]
    %v247 = vld [vmem:[%s1 + $0x42c] sm:$0xff]
    %v248 = vld [vmem:[%s1 + $0x434] sm:$0xf]
    %v249 = vld [vmem:[%s1 + $0x438] sm:$0xff]
    %v250 = vld [vmem:[%s1 + $0x440] sm:$0xf]
    %v251 = vld [vmem:[%s1 + $0x444] sm:$0xff]
    %v252 = vld [vmem:[%s1 + $0x44c] sm:$0xf]
    %v253 = vld [vmem:[%s1 + $0x450] sm:$0xff]
    %v254 = vld [vmem:[%s1 + $0x458] sm:$0xf]
    %v255 = vld [vmem:[%s1 + $0x45c] sm:$0xff]
    %v256 = vld [vmem:[%s1 + $0x464] sm:$0xf]
    %v257 = vld [vmem:[%s1 + $0x468] sm:$0xff]
    %v258 = vld [vmem:[%s1 + $0x470] sm:$0xf]
    %v259 = vld [vmem:[%s1 + $0x474] sm:$0xff]
    %v260 = vld [vmem:[%s1 + $0x47c] sm:$0xf]
    %v453 = vunpack.c.l.b16 %v69
    %v454 = vunpack.c.h.b16 %v69
    %v455 = vunpack.c.l.b16 %v70
    %v456 = vunpack.c.l.b16 %v71
    %v457 = vunpack.c.h.b16 %v71
    %v458 = vunpack.c.l.b16 %v72
    %v459 = vunpack.c.l.b16 %v73
    %v460 = vunpack.c.h.b16 %v73
    %v461 = vunpack.c.l.b16 %v74
    %v462 = vunpack.c.l.b16 %v75
    %v463 = vunpack.c.h.b16 %v75
    %v464 = vunpack.c.l.b16 %v76
    %v465 = vunpack.c.l.b16 %v77
    %v466 = vunpack.c.h.b16 %v77
    %v467 = vunpack.c.l.b16 %v78
    %v468 = vunpack.c.l.b16 %v79
    %v469 = vunpack.c.h.b16 %v79
    %v470 = vunpack.c.l.b16 %v80
    %v471 = vunpack.c.l.b16 %v81
    %v472 = vunpack.c.h.b16 %v81
    %v473 = vunpack.c.l.b16 %v82
    %v474 = vunpack.c.l.b16 %v83
    %v475 = vunpack.c.h.b16 %v83
    %v476 = vunpack.c.l.b16 %v84
    %v477 = vunpack.c.l.b16 %v85
    %v478 = vunpack.c.h.b16 %v85
    %v479 = vunpack.c.l.b16 %v86
    %v480 = vunpack.c.l.b16 %v87
    %v481 = vunpack.c.h.b16 %v87
    %v482 = vunpack.c.l.b16 %v88
    %v483 = vunpack.c.l.b16 %v89
    %v484 = vunpack.c.h.b16 %v89
    %v485 = vunpack.c.l.b16 %v90
    %v486 = vunpack.c.l.b16 %v91
    %v487 = vunpack.c.h.b16 %v91
    %v488 = vunpack.c.l.b16 %v92
    %v489 = vunpack.c.l.b16 %v93
    %v490 = vunpack.c.h.b16 %v93
    %v491 = vunpack.c.l.b16 %v94
    %v492 = vunpack.c.l.b16 %v95
    %v493 = vunpack.c.h.b16 %v95
    %v494 = vunpack.c.l.b16 %v96
    %v495 = vunpack.c.l.b16 %v97
    %v496 = vunpack.c.h.b16 %v97
    %v497 = vunpack.c.l.b16 %v98
    %v498 = vunpack.c.l.b16 %v99
    %v499 = vunpack.c.h.b16 %v99
    %v500 = vunpack.c.l.b16 %v100
    %v501 = vunpack.c.l.b16 %v101
    %v502 = vunpack.c.h.b16 %v101
    %v503 = vunpack.c.l.b16 %v102
    %v504 = vunpack.c.l.b16 %v103
    %v505 = vunpack.c.h.b16 %v103
    %v506 = vunpack.c.l.b16 %v104
    %v507 = vunpack.c.l.b16 %v105
    %v508 = vunpack.c.h.b16 %v105
    %v509 = vunpack.c.l.b16 %v106
    %v510 = vunpack.c.l.b16 %v107
    %v511 = vunpack.c.h.b16 %v107
    %v512 = vunpack.c.l.b16 %v108
    %v513 = vunpack.c.l.b16 %v109
    %v514 = vunpack.c.h.b16 %v109
    %v515 = vunpack.c.l.b16 %v110
    %v516 = vunpack.c.l.b16 %v111
    %v517 = vunpack.c.h.b16 %v111
    %v518 = vunpack.c.l.b16 %v112
    %v519 = vunpack.c.l.b16 %v113
    %v520 = vunpack.c.h.b16 %v113
    %v521 = vunpack.c.l.b16 %v114
    %v522 = vunpack.c.l.b16 %v115
    %v523 = vunpack.c.h.b16 %v115
    %v524 = vunpack.c.l.b16 %v116
    %v525 = vunpack.c.l.b16 %v117
    %v526 = vunpack.c.h.b16 %v117
    %v527 = vunpack.c.l.b16 %v118
    %v528 = vunpack.c.l.b16 %v119
    %v529 = vunpack.c.h.b16 %v119
    %v530 = vunpack.c.l.b16 %v120
    %v531 = vunpack.c.l.b16 %v121
    %v532 = vunpack.c.h.b16 %v121
    %v533 = vunpack.c.l.b16 %v122
    %v534 = vunpack.c.l.b16 %v123
    %v535 = vunpack.c.h.b16 %v123
    %v536 = vunpack.c.l.b16 %v124
    %v537 = vunpack.c.l.b16 %v125
    %v538 = vunpack.c.h.b16 %v125
    %v539 = vunpack.c.l.b16 %v126
    %v540 = vunpack.c.l.b16 %v127
    %v541 = vunpack.c.h.b16 %v127
    %v542 = vunpack.c.l.b16 %v128
    %v543 = vunpack.c.l.b16 %v129
    %v544 = vunpack.c.h.b16 %v129
    %v545 = vunpack.c.l.b16 %v130
    %v546 = vunpack.c.l.b16 %v131
    %v547 = vunpack.c.h.b16 %v131
    %v548 = vunpack.c.l.b16 %v132
    %v549 = vunpack.c.l.b16 %v133
    %v550 = vunpack.c.h.b16 %v133
    %v551 = vunpack.c.l.b16 %v134
    %v552 = vunpack.c.l.b16 %v135
    %v553 = vunpack.c.h.b16 %v135
    %v554 = vunpack.c.l.b16 %v136
    %v555 = vunpack.c.l.b16 %v137
    %v556 = vunpack.c.h.b16 %v137
    %v557 = vunpack.c.l.b16 %v138
    %v558 = vunpack.c.l.b16 %v139
    %v559 = vunpack.c.h.b16 %v139
    %v560 = vunpack.c.l.b16 %v140
    %v561 = vunpack.c.l.b16 %v141
    %v562 = vunpack.c.h.b16 %v141
    %v563 = vunpack.c.l.b16 %v142
    %v564 = vunpack.c.l.b16 %v143
    %v565 = vunpack.c.h.b16 %v143
    %v566 = vunpack.c.l.b16 %v144
    %v567 = vunpack.c.l.b16 %v145
    %v568 = vunpack.c.h.b16 %v145
    %v569 = vunpack.c.l.b16 %v146
    %v570 = vunpack.c.l.b16 %v147
    %v571 = vunpack.c.h.b16 %v147
    %v572 = vunpack.c.l.b16 %v148
    %v573 = vunpack.c.l.b16 %v149
    %v574 = vunpack.c.h.b16 %v149
    %v575 = vunpack.c.l.b16 %v150
    %v576 = vunpack.c.l.b16 %v151
    %v577 = vunpack.c.h.b16 %v151
    %v578 = vunpack.c.l.b16 %v152
    %v579 = vunpack.c.l.b16 %v153
    %v580 = vunpack.c.h.b16 %v153
    %v581 = vunpack.c.l.b16 %v154
    %v582 = vunpack.c.l.b16 %v155
    %v583 = vunpack.c.h.b16 %v155
    %v584 = vunpack.c.l.b16 %v156
    %v585 = vunpack.c.l.b16 %v157
    %v586 = vunpack.c.h.b16 %v157
    %v587 = vunpack.c.l.b16 %v158
    %v588 = vunpack.c.l.b16 %v159
    %v589 = vunpack.c.h.b16 %v159
    %v590 = vunpack.c.l.b16 %v160
    %v591 = vunpack.c.l.b16 %v161
    %v592 = vunpack.c.h.b16 %v161
    %v593 = vunpack.c.l.b16 %v162
    %v594 = vunpack.c.l.b16 %v163
    %v595 = vunpack.c.h.b16 %v163
    %v596 = vunpack.c.l.b16 %v164
    %v597 = vunpack.c.l.b16 %v165
    %v598 = vunpack.c.h.b16 %v165
    %v599 = vunpack.c.l.b16 %v166
    %v600 = vunpack.c.l.b16 %v167
    %v601 = vunpack.c.h.b16 %v167
    %v602 = vunpack.c.l.b16 %v168
    %v603 = vunpack.c.l.b16 %v169
    %v604 = vunpack.c.h.b16 %v169
    %v605 = vunpack.c.l.b16 %v170
    %v606 = vunpack.c.l.b16 %v171
    %v607 = vunpack.c.h.b16 %v171
    %v608 = vunpack.c.l.b16 %v172
    %v609 = vunpack.c.l.b16 %v173
    %v610 = vunpack.c.h.b16 %v173
    %v611 = vunpack.c.l.b16 %v174
    %v612 = vunpack.c.l.b16 %v175
    %v613 = vunpack.c.h.b16 %v175
    %v614 = vunpack.c.l.b16 %v176
    %v615 = vunpack.c.l.b16 %v177
    %v616 = vunpack.c.h.b16 %v177
    %v617 = vunpack.c.l.b16 %v178
    %v618 = vunpack.c.l.b16 %v179
    %v619 = vunpack.c.h.b16 %v179
    %v620 = vunpack.c.l.b16 %v180
    %v621 = vunpack.c.l.b16 %v181
    %v622 = vunpack.c.h.b16 %v181
    %v623 = vunpack.c.l.b16 %v182
    %v624 = vunpack.c.l.b16 %v183
    %v625 = vunpack.c.h.b16 %v183
    %v626 = vunpack.c.l.b16 %v184
    %v627 = vunpack.c.l.b16 %v185
    %v628 = vunpack.c.h.b16 %v185
    %v629 = vunpack.c.l.b16 %v186
    %v630 = vunpack.c.l.b16 %v187
    %v631 = vunpack.c.h.b16 %v187
    %v632 = vunpack.c.l.b16 %v188
    %v633 = vunpack.c.l.b16 %v189
    %v634 = vunpack.c.h.b16 %v189
    %v635 = vunpack.c.l.b16 %v190
    %v636 = vunpack.c.l.b16 %v191
    %v637 = vunpack.c.h.b16 %v191
    %v638 = vunpack.c.l.b16 %v192
    %v639 = vunpack.c.l.b16 %v193
    %v640 = vunpack.c.h.b16 %v193
    %v641 = vunpack.c.l.b16 %v194
    %v642 = vunpack.c.l.b16 %v195
    %v643 = vunpack.c.h.b16 %v195
    %v644 = vunpack.c.l.b16 %v196
    %v645 = vunpack.c.l.b16 %v197
    %v646 = vunpack.c.h.b16 %v197
    %v647 = vunpack.c.l.b16 %v198
    %v648 = vunpack.c.l.b16 %v199
    %v649 = vunpack.c.h.b16 %v199
    %v650 = vunpack.c.l.b16 %v200
    %v651 = vunpack.c.l.b16 %v201
    %v652 = vunpack.c.h.b16 %v201
    %v653 = vunpack.c.l.b16 %v202
    %v654 = vunpack.c.l.b16 %v203
    %v655 = vunpack.c.h.b16 %v203
    %v656 = vunpack.c.l.b16 %v204
    %v657 = vunpack.c.l.b16 %v205
    %v658 = vunpack.c.h.b16 %v205
    %v659 = vunpack.c.l.b16 %v206
    %v660 = vunpack.c.l.b16 %v207
    %v661 = vunpack.c.h.b16 %v207
    %v662 = vunpack.c.l.b16 %v208
    %v663 = vunpack.c.l.b16 %v209
    %v664 = vunpack.c.h.b16 %v209
    %v665 = vunpack.c.l.b16 %v210
    %v666 = vunpack.c.l.b16 %v211
    %v667 = vunpack.c.h.b16 %v211
    %v668 = vunpack.c.l.b16 %v212
    %v669 = vunpack.c.l.b16 %v213
    %v670 = vunpack.c.h.b16 %v213
    %v671 = vunpack.c.l.b16 %v214
    %v672 = vunpack.c.l.b16 %v215
    %v673 = vunpack.c.h.b16 %v215
    %v674 = vunpack.c.l.b16 %v216
    %v675 = vunpack.c.l.b16 %v217
    %v676 = vunpack.c.h.b16 %v217
    %v677 = vunpack.c.l.b16 %v218
    %v678 = vunpack.c.l.b16 %v219
    %v679 = vunpack.c.h.b16 %v219
    %v680 = vunpack.c.l.b16 %v220
    %v681 = vunpack.c.l.b16 %v221
    %v682 = vunpack.c.h.b16 %v221
    %v683 = vunpack.c.l.b16 %v222
    %v684 = vunpack.c.l.b16 %v223
    %v685 = vunpack.c.h.b16 %v223
    %v686 = vunpack.c.l.b16 %v224
    %v687 = vunpack.c.l.b16 %v225
    %v688 = vunpack.c.h.b16 %v225
    %v689 = vunpack.c.l.b16 %v226
    %v690 = vunpack.c.l.b16 %v227
    %v691 = vunpack.c.h.b16 %v227
    %v692 = vunpack.c.l.b16 %v228
    %v693 = vunpack.c.l.b16 %v229
    %v694 = vunpack.c.h.b16 %v229
    %v695 = vunpack.c.l.b16 %v230
    %v696 = vunpack.c.l.b16 %v231
    %v697 = vunpack.c.h.b16 %v231
    %v698 = vunpack.c.l.b16 %v232
    %v699 = vunpack.c.l.b16 %v233
    %v700 = vunpack.c.h.b16 %v233
    %v701 = vunpack.c.l.b16 %v234
    %v702 = vunpack.c.l.b16 %v235
    %v703 = vunpack.c.h.b16 %v235
    %v704 = vunpack.c.l.b16 %v236
    %v705 = vunpack.c.l.b16 %v237
    %v706 = vunpack.c.h.b16 %v237
    %v707 = vunpack.c.l.b16 %v238
    %v708 = vunpack.c.l.b16 %v239
    %v709 = vunpack.c.h.b16 %v239
    %v710 = vunpack.c.l.b16 %v240
    %v711 = vunpack.c.l.b16 %v241
    %v712 = vunpack.c.h.b16 %v241
    %v713 = vunpack.c.l.b16 %v242
    %v714 = vunpack.c.l.b16 %v243
    %v715 = vunpack.c.h.b16 %v243
    %v716 = vunpack.c.l.b16 %v244
    %v717 = vunpack.c.l.b16 %v245
    %v718 = vunpack.c.h.b16 %v245
    %v719 = vunpack.c.l.b16 %v246
    %v720 = vunpack.c.l.b16 %v247
    %v721 = vunpack.c.h.b16 %v247
    %v722 = vunpack.c.l.b16 %v248
    %v723 = vunpack.c.l.b16 %v249
    %v724 = vunpack.c.h.b16 %v249
    %v725 = vunpack.c.l.b16 %v250
    %v726 = vunpack.c.l.b16 %v251
    %v727 = vunpack.c.h.b16 %v251
    %v728 = vunpack.c.l.b16 %v252
    %v729 = vunpack.c.l.b16 %v253
    %v730 = vunpack.c.h.b16 %v253
    %v731 = vunpack.c.l.b16 %v254
    %v732 = vunpack.c.l.b16 %v255
    %v733 = vunpack.c.h.b16 %v255
    %v734 = vunpack.c.l.b16 %v256
    %v735 = vunpack.c.l.b16 %v257
    %v736 = vunpack.c.h.b16 %v257
    %v737 = vunpack.c.l.b16 %v258
    %v738 = vunpack.c.l.b16 %v259
    %v739 = vunpack.c.h.b16 %v259
    %v740 = vunpack.c.l.b16 %v260
    %v741 = vpack.c.b16 %v456, %v453
    %v742 = vpack.c.b16 %v457, %v454
    %v743 = vpack.c.b16 %v458, %v455
    %v744 = vpack.c.b16 %v462, %v459
    %v745 = vpack.c.b16 %v463, %v460
    %v746 = vpack.c.b16 %v464, %v461
    %v747 = vpack.c.b16 %v468, %v465
    %v748 = vpack.c.b16 %v469, %v466
    %v749 = vpack.c.b16 %v470, %v467
    %v750 = vpack.c.b16 %v474, %v471
    %v751 = vpack.c.b16 %v475, %v472
    %v752 = vpack.c.b16 %v476, %v473
    %v753 = vpack.c.b16 %v480, %v477
    %v754 = vpack.c.b16 %v481, %v478
    %v755 = vpack.c.b16 %v482, %v479
    %v756 = vpack.c.b16 %v486, %v483
    %v757 = vpack.c.b16 %v487, %v484
    %v758 = vpack.c.b16 %v488, %v485
    %v759 = vpack.c.b16 %v492, %v489
    %v760 = vpack.c.b16 %v493, %v490
    %v761 = vpack.c.b16 %v494, %v491
    %v762 = vpack.c.b16 %v498, %v495
    %v763 = vpack.c.b16 %v499, %v496
    %v764 = vpack.c.b16 %v500, %v497
    %v765 = vpack.c.b16 %v504, %v501
    %v766 = vpack.c.b16 %v505, %v502
    %v767 = vpack.c.b16 %v506, %v503
    %v768 = vpack.c.b16 %v510, %v507
    %v769 = vpack.c.b16 %v511, %v508
    %v770 = vpack.c.b16 %v512, %v509
    %v771 = vpack.c.b16 %v516, %v513
    %v772 = vpack.c.b16 %v517, %v514
    %v773 = vpack.c.b16 %v518, %v515
    %v774 = vpack.c.b16 %v522, %v519
    %v775 = vpack.c.b16 %v523, %v520
    %v776 = vpack.c.b16 %v524, %v521
    %v777 = vpack.c.b16 %v528, %v525
    %v778 = vpack.c.b16 %v529, %v526
    %v779 = vpack.c.b16 %v530, %v527
    %v780 = vpack.c.b16 %v534, %v531
    %v781 = vpack.c.b16 %v535, %v532
    %v782 = vpack.c.b16 %v536, %v533
    %v783 = vpack.c.b16 %v540, %v537
    %v784 = vpack.c.b16 %v541, %v538
    %v785 = vpack.c.b16 %v542, %v539
    %v786 = vpack.c.b16 %v546, %v543
    %v787 = vpack.c.b16 %v547, %v544
    %v788 = vpack.c.b16 %v548, %v545
    %v789 = vpack.c.b16 %v552, %v549
    %v790 = vpack.c.b16 %v553, %v550
    %v791 = vpack.c.b16 %v554, %v551
    %v792 = vpack.c.b16 %v558, %v555
    %v793 = vpack.c.b16 %v559, %v556
    %v794 = vpack.c.b16 %v560, %v557
    %v795 = vpack.c.b16 %v564, %v561
    %v796 = vpack.c.b16 %v565, %v562
    %v797 = vpack.c.b16 %v566, %v563
    %v798 = vpack.c.b16 %v570, %v567
    %v799 = vpack.c.b16 %v571, %v568
    %v800 = vpack.c.b16 %v572, %v569
    %v801 = vpack.c.b16 %v576, %v573
    %v802 = vpack.c.b16 %v577, %v574
    %v803 = vpack.c.b16 %v578, %v575
    %v804 = vpack.c.b16 %v582, %v579
    %v805 = vpack.c.b16 %v583, %v580
    %v806 = vpack.c.b16 %v584, %v581
    %v807 = vpack.c.b16 %v588, %v585
    %v808 = vpack.c.b16 %v589, %v586
    %v809 = vpack.c.b16 %v590, %v587
    %v810 = vpack.c.b16 %v594, %v591
    %v811 = vpack.c.b16 %v595, %v592
    %v812 = vpack.c.b16 %v596, %v593
    %v813 = vpack.c.b16 %v600, %v597
    %v814 = vpack.c.b16 %v601, %v598
    %v815 = vpack.c.b16 %v602, %v599
    %v816 = vpack.c.b16 %v606, %v603
    %v817 = vpack.c.b16 %v607, %v604
    %v818 = vpack.c.b16 %v608, %v605
    %v819 = vpack.c.b16 %v612, %v609
    %v820 = vpack.c.b16 %v613, %v610
    %v821 = vpack.c.b16 %v614, %v611
    %v822 = vpack.c.b16 %v618, %v615
    %v823 = vpack.c.b16 %v619, %v616
    %v824 = vpack.c.b16 %v620, %v617
    %v825 = vpack.c.b16 %v624, %v621
    %v826 = vpack.c.b16 %v625, %v622
    %v827 = vpack.c.b16 %v626, %v623
    %v828 = vpack.c.b16 %v630, %v627
    %v829 = vpack.c.b16 %v631, %v628
    %v830 = vpack.c.b16 %v632, %v629
    %v831 = vpack.c.b16 %v636, %v633
    %v832 = vpack.c.b16 %v637, %v634
    %v833 = vpack.c.b16 %v638, %v635
    %v834 = vpack.c.b16 %v642, %v639
    %v835 = vpack.c.b16 %v643, %v640
    %v836 = vpack.c.b16 %v644, %v641
    %v837 = vpack.c.b16 %v648, %v645
    %v838 = vpack.c.b16 %v649, %v646
    %v839 = vpack.c.b16 %v650, %v647
    %v840 = vpack.c.b16 %v654, %v651
    %v841 = vpack.c.b16 %v655, %v652
    %v842 = vpack.c.b16 %v656, %v653
    %v843 = vpack.c.b16 %v660, %v657
    %v844 = vpack.c.b16 %v661, %v658
    %v845 = vpack.c.b16 %v662, %v659
    %v846 = vpack.c.b16 %v666, %v663
    %v847 = vpack.c.b16 %v667, %v664
    %v848 = vpack.c.b16 %v668, %v665
    %v849 = vpack.c.b16 %v672, %v669
    %v850 = vpack.c.b16 %v673, %v670
    %v851 = vpack.c.b16 %v674, %v671
    %v852 = vpack.c.b16 %v678, %v675
    %v853 = vpack.c.b16 %v679, %v676
    %v854 = vpack.c.b16 %v680, %v677
    %v855 = vpack.c.b16 %v684, %v681
    %v856 = vpack.c.b16 %v685, %v682
    %v857 = vpack.c.b16 %v686, %v683
    %v858 = vpack.c.b16 %v690, %v687
    %v859 = vpack.c.b16 %v691, %v688
    %v860 = vpack.c.b16 %v692, %v689
    %v861 = vpack.c.b16 %v696, %v693
    %v862 = vpack.c.b16 %v697, %v694
    %v863 = vpack.c.b16 %v698, %v695
    %v864 = vpack.c.b16 %v702, %v699
    %v865 = vpack.c.b16 %v703, %v700
    %v866 = vpack.c.b16 %v704, %v701
    %v867 = vpack.c.b16 %v708, %v705
    %v868 = vpack.c.b16 %v709, %v706
    %v869 = vpack.c.b16 %v710, %v707
    %v870 = vpack.c.b16 %v714, %v711
    %v871 = vpack.c.b16 %v715, %v712
    %v872 = vpack.c.b16 %v716, %v713
    %v873 = vpack.c.b16 %v720, %v717
    %v874 = vpack.c.b16 %v721, %v718
    %v875 = vpack.c.b16 %v722, %v719
    %v876 = vpack.c.b16 %v726, %v723
    %v877 = vpack.c.b16 %v727, %v724
    %v878 = vpack.c.b16 %v728, %v725
    %v879 = vpack.c.b16 %v732, %v729
    %v880 = vpack.c.b16 %v733, %v730
    %v881 = vpack.c.b16 %v734, %v731
    %v882 = vpack.c.b16 %v738, %v735
    %v883 = vpack.c.b16 %v739, %v736
    %v884 = vpack.c.b16 %v740, %v737
    %1029 = vmatprep.subr.bf16.mxu0 %v763
    %1030 = vmatpush1.bf16.msra.mxu0 %v762
    %1031 = vmatprep.subr.bf16.mxu0 %v760
    %1032 = vmatpush1.bf16.msra.mxu0 %v759
    %1033 = vmatprep.subr.bf16.mxu0 %v757
    %1034 = vmatpush1.bf16.msra.mxu0 %v756
    %1035 = vmatprep.subr.bf16.mxu0 %v754
    %1036 = vmatpush1.bf16.msra.mxu0 %v753
    %1037 = vmatprep.subr.bf16.mxu0 %v751
    %1038 = vmatpush1.bf16.msra.mxu0 %v750
    %1039 = vmatprep.subr.bf16.mxu0 %v748
    %1040 = vmatpush1.bf16.msra.mxu0 %v747
    %1041 = vmatprep.subr.bf16.mxu0 %v745
    %1042 = vmatpush1.bf16.msra.mxu0 %v744
    %1043 = vmatprep.subr.bf16.mxu0 %v742
    %1044 = vmatpush1.bf16.msra.mxu0 %v741
    %1045 = vmatprep.subr.bf16.mxu0 %v787
    %1046 = vmatpush2.bf16.msra.mxu0 %v786
    %1047 = vmatprep.subr.bf16.mxu0 %v784
    %1048 = vmatpush2.bf16.msra.mxu0 %v783
    %1049 = vmatprep.subr.bf16.mxu0 %v781
    %1050 = vmatpush2.bf16.msra.mxu0 %v780
    %1051 = vmatprep.subr.bf16.mxu0 %v778
    %1052 = vmatpush2.bf16.msra.mxu0 %v777
    %1053 = vmatprep.subr.bf16.mxu0 %v775
    %1054 = vmatpush2.bf16.msra.mxu0 %v774
    %1055 = vmatprep.subr.bf16.mxu0 %v772
    %1056 = vmatpush2.bf16.msra.mxu0 %v771
    %1057 = vmatprep.subr.bf16.mxu0 %v769
    %1058 = vmatpush2.bf16.msra.mxu0 %v768
    %1059 = vmatprep.subr.bf16.mxu0 %v766
    %1060 = vmatpush2.bf16.msra.mxu0 %v765
    %1061 = vmatprep.mubr.bf16.mxu0 %v58
    %1062 = vmatmul.mubr.bf16.gmra.mxu0 %v57
    %v1063 = vpop.f32.mrf.mxu0
    %v1064 = vadd.f32 0.0, %v1063
    %v1065 = vpop.f32.mrf.mxu0
    %v1066 = vadd.f32 0.0, %v1065
    %v1067 = vpop.f32.mrf.mxu0
    %v1068 = vadd.f32 0.0, %v1067
    %v1069 = vpop.f32.mrf.mxu0
    %v1070 = vadd.f32 0.0, %v1069
    %1071 = vmatprep.mubr.bf16.mxu0 %v64
    %1072 = vmatmul.mubr.bf16.gmra.mxu0 %v63
    %v1073 = vpop.f32.mrf.mxu0
    %v1074 = vadd.f32 0.0, %v1073
    %v1075 = vpop.f32.mrf.mxu0
    %v1076 = vadd.f32 0.0, %v1075
    %v1077 = vpop.f32.mrf.mxu0
    %v1078 = vpop.f32.mrf.mxu0
    %1079 = vdwg.mxu0
    %1080 = vmatprep.subr.bf16.mxu0 %v811
    %1081 = vmatpush1.bf16.msra.mxu0 %v810
    %1082 = vmatprep.subr.bf16.mxu0 %v808
    %1083 = vmatpush1.bf16.msra.mxu0 %v807
    %1084 = vmatprep.subr.bf16.mxu0 %v805
    %1085 = vmatpush1.bf16.msra.mxu0 %v804
    %1086 = vmatprep.subr.bf16.mxu0 %v802
    %1087 = vmatpush1.bf16.msra.mxu0 %v801
    %1088 = vmatprep.subr.bf16.mxu0 %v799
    %1089 = vmatpush1.bf16.msra.mxu0 %v798
    %1090 = vmatprep.subr.bf16.mxu0 %v796
    %1091 = vmatpush1.bf16.msra.mxu0 %v795
    %1092 = vmatprep.subr.bf16.mxu0 %v793
    %1093 = vmatpush1.bf16.msra.mxu0 %v792
    %1094 = vmatprep.subr.bf16.mxu0 %v790
    %1095 = vmatpush1.bf16.msra.mxu0 %v789
    %1096 = vmatprep.subr.bf16.mxu0 %v835
    %1097 = vmatpush2.bf16.msra.mxu0 %v834
    %1098 = vmatprep.subr.bf16.mxu0 %v832
    %1099 = vmatpush2.bf16.msra.mxu0 %v831
    %1100 = vmatprep.subr.bf16.mxu0 %v829
    %1101 = vmatpush2.bf16.msra.mxu0 %v828
    %1102 = vmatprep.subr.bf16.mxu0 %v826
    %1103 = vmatpush2.bf16.msra.mxu0 %v825
    %1104 = vmatprep.subr.bf16.mxu0 %v823
    %1105 = vmatpush2.bf16.msra.mxu0 %v822
    %1106 = vmatprep.subr.bf16.mxu0 %v820
    %1107 = vmatpush2.bf16.msra.mxu0 %v819
    %1108 = vmatprep.subr.bf16.mxu0 %v817
    %1109 = vmatpush2.bf16.msra.mxu0 %v816
    %1110 = vmatprep.subr.bf16.mxu0 %v814
    %1111 = vmatpush2.bf16.msra.mxu0 %v813
    %1112 = vmatprep.mubr.bf16.mxu0 %v60
    %1113 = vmatmul.mubr.bf16.gmra.mxu0 %v59
    %v1114 = vpop.f32.mrf.mxu0
    %v1115 = vadd.f32 %v1064, %v1114
    %v1116 = vpop.f32.mrf.mxu0
    %v1117 = vadd.f32 %v1066, %v1116
    %v1118 = vpop.f32.mrf.mxu0
    %v1119 = vadd.f32 %v1068, %v1118
    %v1120 = vpop.f32.mrf.mxu0
    %v1121 = vadd.f32 %v1070, %v1120
    %1122 = vmatprep.mubr.bf16.mxu0 %v66
    %1123 = vmatmul.mubr.bf16.gmra.mxu0 %v65
    %v1124 = vpop.f32.mrf.mxu0
    %v1125 = vadd.f32 %v1074, %v1124
    %v1126 = vpop.f32.mrf.mxu0
    %v1127 = vadd.f32 %v1076, %v1126
    %v1128 = vpop.f32.mrf.mxu0
    %v1129 = vpop.f32.mrf.mxu0
    %1130 = vdwg.mxu0
    %1131 = vmatprep.subr.bf16.mxu0 %v859
    %1132 = vmatpush1.bf16.msra.mxu0 %v858
    %1133 = vmatprep.subr.bf16.mxu0 %v856
    %1134 = vmatpush1.bf16.msra.mxu0 %v855
    %1135 = vmatprep.subr.bf16.mxu0 %v853
    %1136 = vmatpush1.bf16.msra.mxu0 %v852
    %1137 = vmatprep.subr.bf16.mxu0 %v850
    %1138 = vmatpush1.bf16.msra.mxu0 %v849
    %1139 = vmatprep.subr.bf16.mxu0 %v847
    %1140 = vmatpush1.bf16.msra.mxu0 %v846
    %1141 = vmatprep.subr.bf16.mxu0 %v844
    %1142 = vmatpush1.bf16.msra.mxu0 %v843
    %1143 = vmatprep.subr.bf16.mxu0 %v841
    %1144 = vmatpush1.bf16.msra.mxu0 %v840
    %1145 = vmatprep.subr.bf16.mxu0 %v838
    %1146 = vmatpush1.bf16.msra.mxu0 %v837
    %1147 = vmatprep.subr.bf16.mxu0 %v883
    %1148 = vmatpush2.bf16.msra.mxu0 %v882
    %1149 = vmatprep.subr.bf16.mxu0 %v880
    %1150 = vmatpush2.bf16.msra.mxu0 %v879
    %1151 = vmatprep.subr.bf16.mxu0 %v877
    %1152 = vmatpush2.bf16.msra.mxu0 %v876
    %1153 = vmatprep.subr.bf16.mxu0 %v874
    %1154 = vmatpush2.bf16.msra.mxu0 %v873
    %1155 = vmatprep.subr.bf16.mxu0 %v871
    %1156 = vmatpush2.bf16.msra.mxu0 %v870
    %1157 = vmatprep.subr.bf16.mxu0 %v868
    %1158 = vmatpush2.bf16.msra.mxu0 %v867
    %1159 = vmatprep.subr.bf16.mxu0 %v865
    %1160 = vmatpush2.bf16.msra.mxu0 %v864
    %1161 = vmatprep.subr.bf16.mxu0 %v862
    %1162 = vmatpush2.bf16.msra.mxu0 %v861
    %1163 = vmatprep.mubr.bf16.mxu0 %v62
    %1164 = vmatmul.mubr.bf16.gmra.mxu0 %v61
    %v1165 = vpop.f32.mrf.mxu0
    %v1166 = vadd.f32 %v1115, %v1165
    %v1167 = vpop.f32.mrf.mxu0
    %v1168 = vadd.f32 %v1117, %v1167
    %v1169 = vpop.f32.mrf.mxu0
    %v1170 = vadd.f32 %v1119, %v1169
    %v1171 = vpop.f32.mrf.mxu0
    %v1172 = vadd.f32 %v1121, %v1171
    %1173 = vmatprep.mubr.bf16.mxu0 %v68
    %1174 = vmatmul.mubr.bf16.gmra.mxu0 %v67
    %v1175 = vpop.f32.mrf.mxu0
    %v1176 = vadd.f32 %v1125, %v1175
    %v1177 = vpop.f32.mrf.mxu0
    %v1178 = vadd.f32 %v1127, %v1177
    %v1179 = vpop.f32.mrf.mxu0
    %v1180 = vpop.f32.mrf.mxu0
    %1181 = vdwg.mxu0
    %1182 = vmatprep.subr.bf16.mxu0 0
    %1183 = vmatpush1.bf16.msra.mxu0 %v764
    %1184 = vmatprep.subr.bf16.mxu0 0
    %1185 = vmatpush1.bf16.msra.mxu0 %v761
    %1186 = vmatprep.subr.bf16.mxu0 0
    %1187 = vmatpush1.bf16.msra.mxu0 %v758
    %1188 = vmatprep.subr.bf16.mxu0 0
    %1189 = vmatpush1.bf16.msra.mxu0 %v755
    %1190 = vmatprep.subr.bf16.mxu0 0
    %1191 = vmatpush1.bf16.msra.mxu0 %v752
    %1192 = vmatprep.subr.bf16.mxu0 0
    %1193 = vmatpush1.bf16.msra.mxu0 %v749
    %1194 = vmatprep.subr.bf16.mxu0 0
    %1195 = vmatpush1.bf16.msra.mxu0 %v746
    %1196 = vmatprep.subr.bf16.mxu0 0
    %1197 = vmatpush1.bf16.msra.mxu0 %v743
    %1198 = vmatprep.subr.bf16.mxu0 0
    %1199 = vmatpush2.bf16.msra.mxu0 %v788
    %1200 = vmatprep.subr.bf16.mxu0 0
    %1201 = vmatpush2.bf16.msra.mxu0 %v785
    %1202 = vmatprep.subr.bf16.mxu0 0
    %1203 = vmatpush2.bf16.msra.mxu0 %v782
    %1204 = vmatprep.subr.bf16.mxu0 0
    %1205 = vmatpush2.bf16.msra.mxu0 %v779
    %1206 = vmatprep.subr.bf16.mxu0 0
    %1207 = vmatpush2.bf16.msra.mxu0 %v776
    %1208 = vmatprep.subr.bf16.mxu0 0
    %1209 = vmatpush2.bf16.msra.mxu0 %v773
    %1210 = vmatprep.subr.bf16.mxu0 0
    %1211 = vmatpush2.bf16.msra.mxu0 %v770
    %1212 = vmatprep.subr.bf16.mxu0 0
    %1213 = vmatpush2.bf16.msra.mxu0 %v767
    %1214 = vmatprep.mubr.bf16.mxu0 %v58
    %1215 = vmatmul.mubr.bf16.gmra.mxu0 %v57
    %v1216 = vpop.f32.mrf.mxu0
    %v1217 = vadd.f32 0.0, %v1216
    %v1218 = vpop.f32.mrf.mxu0
    %v1219 = vpop.f32.mrf.mxu0
    %v1220 = vadd.f32 0.0, %v1219
    %v1221 = vpop.f32.mrf.mxu0
    %1222 = vmatprep.mubr.bf16.mxu0 %v64
    %1223 = vmatmul.mubr.bf16.gmra.mxu0 %v63
    %v1224 = vpop.f32.mrf.mxu0
    %v1225 = vadd.f32 0.0, %v1224
    %v1226 = vpop.f32.mrf.mxu0
    %v1227 = vpop.f32.mrf.mxu0
    %v1228 = vpop.f32.mrf.mxu0
    %1229 = vdwg.mxu0
    %1230 = vmatprep.subr.bf16.mxu0 0
    %1231 = vmatpush1.bf16.msra.mxu0 %v812
    %1232 = vmatprep.subr.bf16.mxu0 0
    %1233 = vmatpush1.bf16.msra.mxu0 %v809
    %1234 = vmatprep.subr.bf16.mxu0 0
    %1235 = vmatpush1.bf16.msra.mxu0 %v806
    %1236 = vmatprep.subr.bf16.mxu0 0
    %1237 = vmatpush1.bf16.msra.mxu0 %v803
    %1238 = vmatprep.subr.bf16.mxu0 0
    %1239 = vmatpush1.bf16.msra.mxu0 %v800
    %1240 = vmatprep.subr.bf16.mxu0 0
    %1241 = vmatpush1.bf16.msra.mxu0 %v797
    %1242 = vmatprep.subr.bf16.mxu0 0
    %1243 = vmatpush1.bf16.msra.mxu0 %v794
    %1244 = vmatprep.subr.bf16.mxu0 0
    %1245 = vmatpush1.bf16.msra.mxu0 %v791
    %1246 = vmatprep.subr.bf16.mxu0 0
    %1247 = vmatpush2.bf16.msra.mxu0 %v836
    %1248 = vmatprep.subr.bf16.mxu0 0
    %1249 = vmatpush2.bf16.msra.mxu0 %v833
    %1250 = vmatprep.subr.bf16.mxu0 0
    %1251 = vmatpush2.bf16.msra.mxu0 %v830
    %1252 = vmatprep.subr.bf16.mxu0 0
    %1253 = vmatpush2.bf16.msra.mxu0 %v827
    %1254 = vmatprep.subr.bf16.mxu0 0
    %1255 = vmatpush2.bf16.msra.mxu0 %v824
    %1256 = vmatprep.subr.bf16.mxu0 0
    %1257 = vmatpush2.bf16.msra.mxu0 %v821
    %1258 = vmatprep.subr.bf16.mxu0 0
    %1259 = vmatpush2.bf16.msra.mxu0 %v818
    %1260 = vmatprep.subr.bf16.mxu0 0
    %1261 = vmatpush2.bf16.msra.mxu0 %v815
    %1262 = vmatprep.mubr.bf16.mxu0 %v60
    %1263 = vmatmul.mubr.bf16.gmra.mxu0 %v59
    %v1264 = vpop.f32.mrf.mxu0
    %v1265 = vadd.f32 %v1217, %v1264
    %v1266 = vpop.f32.mrf.mxu0
    %v1267 = vpop.f32.mrf.mxu0
    %v1268 = vadd.f32 %v1220, %v1267
    %v1269 = vpop.f32.mrf.mxu0
    %1270 = vmatprep.mubr.bf16.mxu0 %v66
    %1271 = vmatmul.mubr.bf16.gmra.mxu0 %v65
    %v1272 = vpop.f32.mrf.mxu0
    %v1273 = vadd.f32 %v1225, %v1272
    %v1274 = vpop.f32.mrf.mxu0
    %v1275 = vpop.f32.mrf.mxu0
    %v1276 = vpop.f32.mrf.mxu0
    %1277 = vdwg.mxu0
    %1278 = vmatprep.subr.bf16.mxu0 0
    %1279 = vmatpush1.bf16.msra.mxu0 %v860
    %1280 = vmatprep.subr.bf16.mxu0 0
    %1281 = vmatpush1.bf16.msra.mxu0 %v857
    %1282 = vmatprep.subr.bf16.mxu0 0
    %1283 = vmatpush1.bf16.msra.mxu0 %v854
    %1284 = vmatprep.subr.bf16.mxu0 0
    %1285 = vmatpush1.bf16.msra.mxu0 %v851
    %1286 = vmatprep.subr.bf16.mxu0 0
    %1287 = vmatpush1.bf16.msra.mxu0 %v848
    %1288 = vmatprep.subr.bf16.mxu0 0
    %1289 = vmatpush1.bf16.msra.mxu0 %v845
    %1290 = vmatprep.subr.bf16.mxu0 0
    %1291 = vmatpush1.bf16.msra.mxu0 %v842
    %1292 = vmatprep.subr.bf16.mxu0 0
    %1293 = vmatpush1.bf16.msra.mxu0 %v839
    %1294 = vmatprep.subr.bf16.mxu0 0
    %1295 = vmatpush2.bf16.msra.mxu0 %v884
    %1296 = vmatprep.subr.bf16.mxu0 0
    %1297 = vmatpush2.bf16.msra.mxu0 %v881
    %1298 = vmatprep.subr.bf16.mxu0 0
    %1299 = vmatpush2.bf16.msra.mxu0 %v878
    %1300 = vmatprep.subr.bf16.mxu0 0
    %1301 = vmatpush2.bf16.msra.mxu0 %v875
    %1302 = vmatprep.subr.bf16.mxu0 0
    %1303 = vmatpush2.bf16.msra.mxu0 %v872
    %1304 = vmatprep.subr.bf16.mxu0 0
    %1305 = vmatpush2.bf16.msra.mxu0 %v869
    %1306 = vmatprep.subr.bf16.mxu0 0
    %1307 = vmatpush2.bf16.msra.mxu0 %v866
    %1308 = vmatprep.subr.bf16.mxu0 0
    %1309 = vmatpush2.bf16.msra.mxu0 %v863
    %1310 = vmatprep.mubr.bf16.mxu0 %v62
    %1311 = vmatmul.mubr.bf16.gmra.mxu0 %v61
    %v1312 = vpop.f32.mrf.mxu0
    %v1313 = vadd.f32 %v1265, %v1312
    %v1314 = vpop.f32.mrf.mxu0
    %v1315 = vpop.f32.mrf.mxu0
    %v1316 = vadd.f32 %v1268, %v1315
    %v1317 = vpop.f32.mrf.mxu0
    %1318 = vmatprep.mubr.bf16.mxu0 %v68
    %1319 = vmatmul.mubr.bf16.gmra.mxu0 %v67
    %v1320 = vpop.f32.mrf.mxu0
    %v1321 = vadd.f32 %v1273, %v1320
    %v1322 = vpop.f32.mrf.mxu0
    %v1323 = vpop.f32.mrf.mxu0
    %v1324 = vpop.f32.mrf.mxu0
    %1325 = vdwg.mxu0
    %vm1333 = vcmask 1046528
    %v1334 = vrot.slane %v1166, 1
    %v1335 = vrot.slane %v1170, 1
    %v1336 = vsel %vm1333, %v1334, %v1335
    %v1337 = vrot.slane %v1168, 1
    %v1338 = vrot.slane %v1172, 1
    %v1339 = vsel %vm1333, %v1337, %v1338
    %v1340 = vrot.slane %v1176, 1
    %v1341 = vsel %vm1333, %v1335, %v1340
    %v1342 = vrot.slane %v1178, 1
    %v1343 = vsel %vm1333, %v1338, %v1342
    %v1344 = vrot.slane 0.0, 1
    %v1345 = vsel %vm1333, %v1340, %v1344
    %v1346 = vsel %vm1333, %v1342, %v1344
    %1347 = vrot.lane.b32.xlu0 %v1336, 32
    %v1348 = vpop.permute.xlu0 %1347
    %1349 = vrot.lane.b32.xlu0 %v1339, 32
    %v1350 = vpop.permute.xlu0 %1349
    %1351 = vrot.lane.b32.xlu0 %v1341, 32
    %v1352 = vpop.permute.xlu0 %1351
    %1353 = vrot.lane.b32.xlu0 %v1343, 32
    %v1354 = vpop.permute.xlu0 %1353
    %1355 = vrot.lane.b32.xlu0 %v1345, 32
    %v1356 = vpop.permute.xlu0 %1355
    %1357 = vrot.lane.b32.xlu0 %v1346, 32
    %v1358 = vpop.permute.xlu0 %1357
    %vm1359 = vcmask 261120
    %v1360 = vsel %vm1359, %v1348, %v1350
    %v1361 = vsel %vm1359, %v1352, %v1354
    %v1362 = vsel %vm1359, %v1356, %v1358
    %v1366 = vadd.f32 %v1166, %v1360
    %v1367 = vadd.f32 %v1170, %v1361
    %v1368 = vadd.f32 %v1176, %v1362
    %vm1372 = vcmask 1045504
    %v1373 = vrot.slane %v1168, 2
    %v1374 = vrot.slane %v1172, 2
    %v1375 = vsel %vm1372, %v1373, %v1374
    %v1376 = vrot.slane %v1313, 2
    %v1377 = vrot.slane %v1316, 2
    %v1378 = vsel %vm1372, %v1376, %v1377
    %v1379 = vrot.slane %v1178, 2
    %v1380 = vsel %vm1372, %v1374, %v1379
    %v1381 = vrot.slane %v1321, 2
    %v1382 = vsel %vm1372, %v1377, %v1381
    %v1383 = vrot.slane 0.0, 2
    %v1384 = vsel %vm1372, %v1379, %v1383
    %v1385 = vsel %vm1372, %v1381, %v1383
    %1386 = vrot.lane.b32.xlu0 %v1375, 64
    %v1387 = vpop.permute.xlu0 %1386
    %1388 = vrot.lane.b32.xlu0 %v1378, 64
    %v1389 = vpop.permute.xlu0 %1388
    %1390 = vrot.lane.b32.xlu0 %v1380, 64
    %v1391 = vpop.permute.xlu0 %1390
    %1392 = vrot.lane.b32.xlu0 %v1382, 64
    %v1393 = vpop.permute.xlu0 %1392
    %1394 = vrot.lane.b32.xlu0 %v1384, 64
    %v1395 = vpop.permute.xlu0 %1394
    %1396 = vrot.lane.b32.xlu0 %v1385, 64
    %v1397 = vpop.permute.xlu0 %1396
    %vm1398 = vcmask 523264
    %v1399 = vsel %vm1398, %v1387, %v1389
    %v1400 = vsel %vm1398, %v1391, %v1393
    %v1401 = vsel %vm1398, %v1395, %v1397
    %v1405 = vadd.f32 %v1366, %v1399
    %v1406 = vadd.f32 %v1367, %v1400
    %v1407 = vadd.f32 %v1368, %v1401
    %vm1408 = vcmask 1044480
    %v1409 = vrot.slane %v1313, 3
    %v1410 = vrot.slane %v1316, 3
    %v1411 = vsel %vm1408, %v1409, %v1410
    %v1412 = vrot.slane %v1321, 3
    %v1413 = vsel %vm1408, %v1410, %v1412
    %v1414 = vrot.slane 0.0, 3
    %v1415 = vsel %vm1408, %v1412, %v1414
    %1416 = vrot.lane.b32.xlu0 %v1411, 96
    %v1417 = vpop.permute.xlu0 %1416
    %1418 = vrot.lane.b32.xlu0 %v1413, 96
    %v1419 = vpop.permute.xlu0 %1418
    %1420 = vrot.lane.b32.xlu0 %v1415, 96
    %v1421 = vpop.permute.xlu0 %1420
    %v1425 = vadd.f32 %v1405, %v1417
    %v1426 = vadd.f32 %v1406, %v1419
    %v1427 = vadd.f32 %v1407, %v1421
    %v1428 = vld [vmem:[%s2] sm:$0x1]
    %v1430 = vlaneseq
    %v1431 = vshrl.u32 %v1430, 7
    %v1432 = vsub.s32 0, %v1431
    %v1433 = vrot.slane %v1428, %v1432
    %v1435 = vadd.f32 %v1425, %v1433
    %v1436 = vadd.f32 %v1426, %v1433
    %v1437 = vadd.f32 %v1427, %v1433
    %v1438 = vmax.f32 %v1435, 0.0
    %v1439 = vmax.f32 %v1436, 0.0
    %v1440 = vmax.f32 %v1437, 0.0
    %v1441 = vlaneseq
    %v1442 = vshrl.u32 %v1441, 7
    %v1443 = vadd.s32 %v1442, 8
    %vm1444 = vcmp.lt.s32.totalorder %v1442, 9
    %vm1445 = vcmp.lt.s32.totalorder %v1443, 9
    %vm1446 = vcmp.lt.s32.totalorder %v1442, 8
    %vm1447 = vcmp.lt.s32.totalorder %v1443, 8
    %v1448 = vsel %vm1444, %v1438, 0.0
    %v1449 = vsel %vm1445, %v1439, 0.0
    %v1450 = vsel %vm1446, %v1438, 0.0
    %v1451 = vsel %vm1447, %v1439, 0.0
    %1454 = vrot.lane.b32.xlu0 %v1450, 96
    %v1455 = vpop.permute.xlu0 %1454
    %1456 = vrot.lane.b32.xlu0 %v1451, 96
    %v1457 = vpop.permute.xlu0 %1456
    %v1460 = vmax.f32 %v1448, %v1455
    %v1461 = vmax.f32 %v1449, %v1457
    %1464 = vrot.lane.b32.xlu0 %v1460, 96
    %v1465 = vpop.permute.xlu0 %1464
    %1466 = vrot.lane.b32.xlu0 %v1461, 96
    %v1467 = vpop.permute.xlu0 %1466
    %v1470 = vmax.f32 %v1438, %v1465
    %v1471 = vmax.f32 %v1439, %v1467
    %v1472 = vmul.f32 %v1470, %v1470
    %v1473 = vmul.f32 %v1471, %v1471
    %v1474 = vsel %vm1359, %v1472, 0.0
    %1475 = vadd.xlane.f32.xlu0 %v1474
    %v1476 = vpop.xlane.xlu0 %1475
    %vm1477 = vcmask 254976
    %v1478 = vsel %vm1477, %v1473, 0.0
    %1479 = vadd.xlane.f32.xlu0 %v1478
    %v1480 = vpop.xlane.xlu0 %1479
    %v1481 = vmax.f32 %v1476, 1e-24
    %v1482 = vmax.f32 %v1480, 1e-24
    %v1483 = vrsqrt.pop %v1481
    %v1484 = vrsqrt.pop %v1482
    %v1485 = vmul.f32 %v1470, %v1483
    %v1486 = vmul.f32 %v1471, %v1484
    %1487 = vst.msk [vmem:[%s6] sm:$0xff] %vm1359, %v1485
    %1488 = vst.msk [vmem:[%s6 + $0x8] sm:$0x3] %vm1477, %v1486
    %vm1491 = vcmask 1043456
    %v1492 = vrot.slane %v1439, 4
    %v1493 = vrot.slane %v1440, 4
    %v1494 = vsel %vm1491, %v1492, %v1493
    %1495 = vrot.lane.b32.xlu0 %v1494, 96
    %v1496 = vpop.permute.xlu0 %1495
    %1497 = vrot.lane.b32.xlu0 %v1493, 96
    %v1498 = vpop.permute.xlu0 %1497
    %v1501 = vsel %vm1444, %v1496, 0.0
    %v1502 = vsel %vm1445, %v1498, 0.0
    %1503 = vrot.lane.b32.xlu0 %v1494, 64
    %v1504 = vpop.permute.xlu0 %1503
    %1505 = vrot.lane.b32.xlu0 %v1493, 64
    %v1506 = vpop.permute.xlu0 %1505
    %v1509 = vsel %vm1446, %v1504, 0.0
    %v1510 = vsel %vm1447, %v1506, 0.0
    %v1511 = vmax.f32 %v1501, %v1509
    %v1512 = vmax.f32 %v1502, %v1510
    %v1515 = vrot.slane %v1511, 4
    %v1516 = vrot.slane %v1512, 4
    %v1517 = vsel %vm1491, %v1515, %v1516
    %v1520 = vmax.f32 %v1439, %v1515
    %v1521 = vmax.f32 %v1440, %v1517
    %v1522 = vmul.f32 %v1520, %v1520
    %v1523 = vmul.f32 %v1521, %v1521
    %vm1524 = vcmask 261124
    %v1525 = vsel %vm1524, %v1522, 0.0
    %1526 = vadd.xlane.f32.xlu0 %v1525
    %v1527 = vpop.xlane.xlu0 %1526
    %vm1528 = vcmask 259072
    %v1529 = vsel %vm1528, %v1523, 0.0
    %1530 = vadd.xlane.f32.xlu0 %v1529
    %v1531 = vpop.xlane.xlu0 %1530
    %v1532 = vmax.f32 %v1527, 1e-24
    %v1533 = vmax.f32 %v1531, 1e-24
    %v1534 = vrsqrt.pop %v1532
    %v1535 = vrsqrt.pop %v1533
    %v1536 = vmul.f32 %v1520, %v1534
    %v1537 = vmul.f32 %v1521, %v1535
    %s1538 = scalar_lea.vmem %s6, 16
    %1539 = vst.msk [vmem:[%s1538 - $0x4] sm:$0xf0] %vm1524, %v1536
    %1540 = vst.msk [vmem:[%s1538 + $0x4] sm:$0x3f] %vm1528, %v1537
    %v1541 = vld [vmem:[#allocation2] sm:$0xff]
    %v1542 = vld [vmem:[#allocation2 + $0x8] sm:$0xf]
    %v1545 = vcombine.high %v1541, %v1541
    %v1547 = vunpack.c.l.s4 1983009808
    %v1548 = vunpack.c.0.s8 %v1547
    %v1549 = vlaneseq
    %v1550 = vshrl.u32 %v1549, 7
    %v1551 = vsub.s32 %v1548, %v1550
    %v1552 = vrot.slane %v1541, %v1551
    %v1554 = vunpack.c.l.s4 1983009808
    %v1555 = vunpack.c.0.s8 %v1554
    %v1556 = vlaneseq
    %v1557 = vshrl.u32 %v1556, 7
    %v1558 = vsub.s32 %v1555, %v1557
    %v1559 = vrot.slane %v1545, %v1558
    %v1560 = vcombine.high %v1552, %v1552
    %v1561 = vcombine.high %v1559, %v1559
    %v1563 = vunpack.c.l.s4 1983009808
    %v1564 = vunpack.c.0.s8 %v1563
    %v1565 = vlaneseq
    %v1566 = vshrl.u32 %v1565, 7
    %v1567 = vsub.s32 %v1564, %v1566
    %v1568 = vrot.slane %v1542, %v1567
    %v1569 = vcombine.high %v1568, %v1568
    %v1576 = vpack.c.bf16 %v1552, %v1552
    %v1577 = vpack.c.bf16 %v1560, %v1560
    %v1578 = vpack.c.bf16 %v1559, %v1559
    %v1579 = vpack.c.bf16 %v1561, %v1561
    %v1580 = vpack.c.bf16 %v1568, %v1568
    %v1581 = vpack.c.bf16 %v1569, %v1569
    %v1582 = vld [vmem:[%s4] sm:$0xf]
    %v1583 = vld [vmem:[%s4 + $0x4] sm:$0xf]
    %v1584 = vld [vmem:[%s4 + $0x8] sm:$0xf]
    %v1585 = vld [vmem:[%s4 + $0xc] sm:$0xf]
    %v1586 = vld [vmem:[%s4 + $0x10] sm:$0xf]
    %v1587 = vld [vmem:[%s4 + $0x14] sm:$0xf]
    %v1588 = vld [vmem:[%s4 + $0x18] sm:$0xf]
    %v1589 = vld [vmem:[%s4 + $0x1c] sm:$0xf]
    %v1590 = vld [vmem:[%s4 + $0x20] sm:$0xf]
    %v1591 = vld [vmem:[%s4 + $0x24] sm:$0xf]
    %v1592 = vld [vmem:[%s4 + $0x28] sm:$0xf]
    %v1593 = vld [vmem:[%s4 + $0x2c] sm:$0xf]
    %v1594 = vld [vmem:[%s4 + $0x30] sm:$0xf]
    %v1595 = vld [vmem:[%s4 + $0x34] sm:$0xf]
    %v1596 = vld [vmem:[%s4 + $0x38] sm:$0xf]
    %v1597 = vld [vmem:[%s4 + $0x3c] sm:$0xf]
    %v1598 = vld [vmem:[%s4 + $0x40] sm:$0xf]
    %v1599 = vld [vmem:[%s4 + $0x44] sm:$0xf]
    %v1600 = vld [vmem:[%s4 + $0x48] sm:$0xf]
    %v1601 = vld [vmem:[%s4 + $0x4c] sm:$0xf]
    %v1602 = vld [vmem:[%s4 + $0x50] sm:$0xf]
    %v1603 = vld [vmem:[%s4 + $0x54] sm:$0xf]
    %v1604 = vld [vmem:[%s4 + $0x58] sm:$0xf]
    %v1605 = vld [vmem:[%s4 + $0x5c] sm:$0xf]
    %v1606 = vld [vmem:[%s4 + $0x60] sm:$0xf]
    %v1607 = vld [vmem:[%s4 + $0x64] sm:$0xf]
    %v1608 = vld [vmem:[%s4 + $0x68] sm:$0xf]
    %v1609 = vld [vmem:[%s4 + $0x6c] sm:$0xf]
    %v1610 = vld [vmem:[%s4 + $0x70] sm:$0xf]
    %v1611 = vld [vmem:[%s4 + $0x74] sm:$0xf]
    %v1612 = vld [vmem:[%s4 + $0x78] sm:$0xf]
    %v1613 = vld [vmem:[%s4 + $0x7c] sm:$0xf]
    %v1614 = vld [vmem:[%s4 + $0x80] sm:$0xf]
    %v1615 = vld [vmem:[%s4 + $0x84] sm:$0xf]
    %v1616 = vld [vmem:[%s4 + $0x88] sm:$0xf]
    %v1617 = vld [vmem:[%s4 + $0x8c] sm:$0xf]
    %v1618 = vld [vmem:[%s4 + $0x90] sm:$0xf]
    %v1619 = vld [vmem:[%s4 + $0x94] sm:$0xf]
    %v1620 = vld [vmem:[%s4 + $0x98] sm:$0xf]
    %v1621 = vld [vmem:[%s4 + $0x9c] sm:$0xf]
    %v1622 = vld [vmem:[%s4 + $0xa0] sm:$0xf]
    %v1623 = vld [vmem:[%s4 + $0xa4] sm:$0xf]
    %v1624 = vld [vmem:[%s4 + $0xa8] sm:$0xf]
    %v1625 = vld [vmem:[%s4 + $0xac] sm:$0xf]
    %v1626 = vld [vmem:[%s4 + $0xb0] sm:$0xf]
    %v1627 = vld [vmem:[%s4 + $0xb4] sm:$0xf]
    %v1628 = vld [vmem:[%s4 + $0xb8] sm:$0xf]
    %v1629 = vld [vmem:[%s4 + $0xbc] sm:$0xf]
    %v1630 = vld [vmem:[%s4 + $0xc0] sm:$0xf]
    %v1631 = vld [vmem:[%s4 + $0xc4] sm:$0xf]
    %v1632 = vld [vmem:[%s4 + $0xc8] sm:$0xf]
    %v1633 = vld [vmem:[%s4 + $0xcc] sm:$0xf]
    %v1634 = vld [vmem:[%s4 + $0xd0] sm:$0xf]
    %v1635 = vld [vmem:[%s4 + $0xd4] sm:$0xf]
    %v1636 = vld [vmem:[%s4 + $0xd8] sm:$0xf]
    %v1637 = vld [vmem:[%s4 + $0xdc] sm:$0xf]
    %v1638 = vld [vmem:[%s4 + $0xe0] sm:$0xf]
    %v1639 = vld [vmem:[%s4 + $0xe4] sm:$0xf]
    %v1640 = vld [vmem:[%s4 + $0xe8] sm:$0xf]
    %v1641 = vld [vmem:[%s4 + $0xec] sm:$0xf]
    %v1642 = vld [vmem:[%s4 + $0xf0] sm:$0xf]
    %v1643 = vld [vmem:[%s4 + $0xf4] sm:$0xf]
    %v1644 = vld [vmem:[%s4 + $0xf8] sm:$0xf]
    %v1645 = vld [vmem:[%s4 + $0xfc] sm:$0xf]
    %v1646 = vld [vmem:[%s4 + $0x100] sm:$0xf]
    %v1647 = vld [vmem:[%s4 + $0x104] sm:$0xf]
    %v1648 = vld [vmem:[%s4 + $0x108] sm:$0xf]
    %v1649 = vld [vmem:[%s4 + $0x10c] sm:$0xf]
    %v1650 = vld [vmem:[%s4 + $0x110] sm:$0xf]
    %v1651 = vld [vmem:[%s4 + $0x114] sm:$0xf]
    %v1652 = vld [vmem:[%s4 + $0x118] sm:$0xf]
    %v1653 = vld [vmem:[%s4 + $0x11c] sm:$0xf]
    %v1654 = vld [vmem:[%s4 + $0x120] sm:$0xf]
    %v1655 = vld [vmem:[%s4 + $0x124] sm:$0xf]
    %v1656 = vld [vmem:[%s4 + $0x128] sm:$0xf]
    %v1657 = vld [vmem:[%s4 + $0x12c] sm:$0xf]
    %v1658 = vld [vmem:[%s4 + $0x130] sm:$0xf]
    %v1659 = vld [vmem:[%s4 + $0x134] sm:$0xf]
    %v1660 = vld [vmem:[%s4 + $0x138] sm:$0xf]
    %v1661 = vld [vmem:[%s4 + $0x13c] sm:$0xf]
    %v1662 = vld [vmem:[%s4 + $0x140] sm:$0xf]
    %v1663 = vld [vmem:[%s4 + $0x144] sm:$0xf]
    %v1664 = vld [vmem:[%s4 + $0x148] sm:$0xf]
    %v1665 = vld [vmem:[%s4 + $0x14c] sm:$0xf]
    %v1666 = vld [vmem:[%s4 + $0x150] sm:$0xf]
    %v1667 = vld [vmem:[%s4 + $0x154] sm:$0xf]
    %v1668 = vld [vmem:[%s4 + $0x158] sm:$0xf]
    %v1669 = vld [vmem:[%s4 + $0x15c] sm:$0xf]
    %v1670 = vld [vmem:[%s4 + $0x160] sm:$0xf]
    %v1671 = vld [vmem:[%s4 + $0x164] sm:$0xf]
    %v1672 = vld [vmem:[%s4 + $0x168] sm:$0xf]
    %v1673 = vld [vmem:[%s4 + $0x16c] sm:$0xf]
    %v1674 = vld [vmem:[%s4 + $0x170] sm:$0xf]
    %v1675 = vld [vmem:[%s4 + $0x174] sm:$0xf]
    %v1676 = vld [vmem:[%s4 + $0x178] sm:$0xf]
    %v1677 = vld [vmem:[%s4 + $0x17c] sm:$0xf]
    %v1678 = vld [vmem:[%s5] sm:$0x1]
    %v1680 = vlaneseq
    %v1681 = vshrl.u32 %v1680, 7
    %v1682 = vsub.s32 0, %v1681
    %v1683 = vrot.slane %v1678, %v1682
    %v1781 = vunpack.c.l.b16 %v1582
    %v1782 = vunpack.c.l.b16 %v1583
    %v1783 = vunpack.c.l.b16 %v1584
    %v1784 = vunpack.c.l.b16 %v1585
    %v1785 = vunpack.c.l.b16 %v1586
    %v1786 = vunpack.c.l.b16 %v1587
    %v1787 = vunpack.c.l.b16 %v1588
    %v1788 = vunpack.c.l.b16 %v1589
    %v1789 = vunpack.c.l.b16 %v1590
    %v1790 = vunpack.c.l.b16 %v1591
    %v1791 = vunpack.c.l.b16 %v1592
    %v1792 = vunpack.c.l.b16 %v1593
    %v1793 = vunpack.c.l.b16 %v1594
    %v1794 = vunpack.c.l.b16 %v1595
    %v1795 = vunpack.c.l.b16 %v1596
    %v1796 = vunpack.c.l.b16 %v1597
    %v1797 = vunpack.c.l.b16 %v1598
    %v1798 = vunpack.c.l.b16 %v1599
    %v1799 = vunpack.c.l.b16 %v1600
    %v1800 = vunpack.c.l.b16 %v1601
    %v1801 = vunpack.c.l.b16 %v1602
    %v1802 = vunpack.c.l.b16 %v1603
    %v1803 = vunpack.c.l.b16 %v1604
    %v1804 = vunpack.c.l.b16 %v1605
    %v1805 = vunpack.c.l.b16 %v1606
    %v1806 = vunpack.c.l.b16 %v1607
    %v1807 = vunpack.c.l.b16 %v1608
    %v1808 = vunpack.c.l.b16 %v1609
    %v1809 = vunpack.c.l.b16 %v1610
    %v1810 = vunpack.c.l.b16 %v1611
    %v1811 = vunpack.c.l.b16 %v1612
    %v1812 = vunpack.c.l.b16 %v1613
    %v1813 = vunpack.c.l.b16 %v1614
    %v1814 = vunpack.c.l.b16 %v1615
    %v1815 = vunpack.c.l.b16 %v1616
    %v1816 = vunpack.c.l.b16 %v1617
    %v1817 = vunpack.c.l.b16 %v1618
    %v1818 = vunpack.c.l.b16 %v1619
    %v1819 = vunpack.c.l.b16 %v1620
    %v1820 = vunpack.c.l.b16 %v1621
    %v1821 = vunpack.c.l.b16 %v1622
    %v1822 = vunpack.c.l.b16 %v1623
    %v1823 = vunpack.c.l.b16 %v1624
    %v1824 = vunpack.c.l.b16 %v1625
    %v1825 = vunpack.c.l.b16 %v1626
    %v1826 = vunpack.c.l.b16 %v1627
    %v1827 = vunpack.c.l.b16 %v1628
    %v1828 = vunpack.c.l.b16 %v1629
    %v1829 = vunpack.c.l.b16 %v1630
    %v1830 = vunpack.c.l.b16 %v1631
    %v1831 = vunpack.c.l.b16 %v1632
    %v1832 = vunpack.c.l.b16 %v1633
    %v1833 = vunpack.c.l.b16 %v1634
    %v1834 = vunpack.c.l.b16 %v1635
    %v1835 = vunpack.c.l.b16 %v1636
    %v1836 = vunpack.c.l.b16 %v1637
    %v1837 = vunpack.c.l.b16 %v1638
    %v1838 = vunpack.c.l.b16 %v1639
    %v1839 = vunpack.c.l.b16 %v1640
    %v1840 = vunpack.c.l.b16 %v1641
    %v1841 = vunpack.c.l.b16 %v1642
    %v1842 = vunpack.c.l.b16 %v1643
    %v1843 = vunpack.c.l.b16 %v1644
    %v1844 = vunpack.c.l.b16 %v1645
    %v1845 = vunpack.c.l.b16 %v1646
    %v1846 = vunpack.c.l.b16 %v1647
    %v1847 = vunpack.c.l.b16 %v1648
    %v1848 = vunpack.c.l.b16 %v1649
    %v1849 = vunpack.c.l.b16 %v1650
    %v1850 = vunpack.c.l.b16 %v1651
    %v1851 = vunpack.c.l.b16 %v1652
    %v1852 = vunpack.c.l.b16 %v1653
    %v1853 = vunpack.c.l.b16 %v1654
    %v1854 = vunpack.c.l.b16 %v1655
    %v1855 = vunpack.c.l.b16 %v1656
    %v1856 = vunpack.c.l.b16 %v1657
    %v1857 = vunpack.c.l.b16 %v1658
    %v1858 = vunpack.c.l.b16 %v1659
    %v1859 = vunpack.c.l.b16 %v1660
    %v1860 = vunpack.c.l.b16 %v1661
    %v1861 = vunpack.c.l.b16 %v1662
    %v1862 = vunpack.c.l.b16 %v1663
    %v1863 = vunpack.c.l.b16 %v1664
    %v1864 = vunpack.c.l.b16 %v1665
    %v1865 = vunpack.c.l.b16 %v1666
    %v1866 = vunpack.c.l.b16 %v1667
    %v1867 = vunpack.c.l.b16 %v1668
    %v1868 = vunpack.c.l.b16 %v1669
    %v1869 = vunpack.c.l.b16 %v1670
    %v1870 = vunpack.c.l.b16 %v1671
    %v1871 = vunpack.c.l.b16 %v1672
    %v1872 = vunpack.c.l.b16 %v1673
    %v1873 = vunpack.c.l.b16 %v1674
    %v1874 = vunpack.c.l.b16 %v1675
    %v1875 = vunpack.c.l.b16 %v1676
    %v1876 = vunpack.c.l.b16 %v1677
    %v1877 = vpack.c.b16 %v1782, %v1781
    %v1878 = vpack.c.b16 %v1784, %v1783
    %v1879 = vpack.c.b16 %v1786, %v1785
    %v1880 = vpack.c.b16 %v1788, %v1787
    %v1881 = vpack.c.b16 %v1790, %v1789
    %v1882 = vpack.c.b16 %v1792, %v1791
    %v1883 = vpack.c.b16 %v1794, %v1793
    %v1884 = vpack.c.b16 %v1796, %v1795
    %v1885 = vpack.c.b16 %v1798, %v1797
    %v1886 = vpack.c.b16 %v1800, %v1799
    %v1887 = vpack.c.b16 %v1802, %v1801
    %v1888 = vpack.c.b16 %v1804, %v1803
    %v1889 = vpack.c.b16 %v1806, %v1805
    %v1890 = vpack.c.b16 %v1808, %v1807
    %v1891 = vpack.c.b16 %v1810, %v1809
    %v1892 = vpack.c.b16 %v1812, %v1811
    %v1893 = vpack.c.b16 %v1814, %v1813
    %v1894 = vpack.c.b16 %v1816, %v1815
    %v1895 = vpack.c.b16 %v1818, %v1817
    %v1896 = vpack.c.b16 %v1820, %v1819
    %v1897 = vpack.c.b16 %v1822, %v1821
    %v1898 = vpack.c.b16 %v1824, %v1823
    %v1899 = vpack.c.b16 %v1826, %v1825
    %v1900 = vpack.c.b16 %v1828, %v1827
    %v1901 = vpack.c.b16 %v1830, %v1829
    %v1902 = vpack.c.b16 %v1832, %v1831
    %v1903 = vpack.c.b16 %v1834, %v1833
    %v1904 = vpack.c.b16 %v1836, %v1835
    %v1905 = vpack.c.b16 %v1838, %v1837
    %v1906 = vpack.c.b16 %v1840, %v1839
    %v1907 = vpack.c.b16 %v1842, %v1841
    %v1908 = vpack.c.b16 %v1844, %v1843
    %v1909 = vpack.c.b16 %v1846, %v1845
    %v1910 = vpack.c.b16 %v1848, %v1847
    %v1911 = vpack.c.b16 %v1850, %v1849
    %v1912 = vpack.c.b16 %v1852, %v1851
    %v1913 = vpack.c.b16 %v1854, %v1853
    %v1914 = vpack.c.b16 %v1856, %v1855
    %v1915 = vpack.c.b16 %v1858, %v1857
    %v1916 = vpack.c.b16 %v1860, %v1859
    %v1917 = vpack.c.b16 %v1862, %v1861
    %v1918 = vpack.c.b16 %v1864, %v1863
    %v1919 = vpack.c.b16 %v1866, %v1865
    %v1920 = vpack.c.b16 %v1868, %v1867
    %v1921 = vpack.c.b16 %v1870, %v1869
    %v1922 = vpack.c.b16 %v1872, %v1871
    %v1923 = vpack.c.b16 %v1874, %v1873
    %v1924 = vpack.c.b16 %v1876, %v1875
    %1973 = vmatprep.subr.bf16.mxu0 0
    %1974 = vmatpush1.bf16.msra.mxu0 %v1884
    %1975 = vmatprep.subr.bf16.mxu0 0
    %1976 = vmatpush1.bf16.msra.mxu0 %v1883
    %1977 = vmatprep.subr.bf16.mxu0 0
    %1978 = vmatpush1.bf16.msra.mxu0 %v1882
    %1979 = vmatprep.subr.bf16.mxu0 0
    %1980 = vmatpush1.bf16.msra.mxu0 %v1881
    %1981 = vmatprep.subr.bf16.mxu0 0
    %1982 = vmatpush1.bf16.msra.mxu0 %v1880
    %1983 = vmatprep.subr.bf16.mxu0 0
    %1984 = vmatpush1.bf16.msra.mxu0 %v1879
    %1985 = vmatprep.subr.bf16.mxu0 0
    %1986 = vmatpush1.bf16.msra.mxu0 %v1878
    %1987 = vmatprep.subr.bf16.mxu0 0
    %1988 = vmatpush1.bf16.msra.mxu0 %v1877
    %1989 = vmatprep.subr.bf16.mxu0 0
    %1990 = vmatpush2.bf16.msra.mxu0 %v1892
    %1991 = vmatprep.subr.bf16.mxu0 0
    %1992 = vmatpush2.bf16.msra.mxu0 %v1891
    %1993 = vmatprep.subr.bf16.mxu0 0
    %1994 = vmatpush2.bf16.msra.mxu0 %v1890
    %1995 = vmatprep.subr.bf16.mxu0 0
    %1996 = vmatpush2.bf16.msra.mxu0 %v1889
    %1997 = vmatprep.subr.bf16.mxu0 0
    %1998 = vmatpush2.bf16.msra.mxu0 %v1888
    %1999 = vmatprep.subr.bf16.mxu0 0
    %2000 = vmatpush2.bf16.msra.mxu0 %v1887
    %2001 = vmatprep.subr.bf16.mxu0 0
    %2002 = vmatpush2.bf16.msra.mxu0 %v1886
    %2003 = vmatprep.subr.bf16.mxu0 0
    %2004 = vmatpush2.bf16.msra.mxu0 %v1885
    %2005 = vmatprep.mubr.bf16.mxu0 %v1577
    %2006 = vmatmul.mubr.bf16.gmra.mxu0 %v1576
    %v2007 = vpop.f32.mrf.mxu0
    %v2008 = vadd.f32 %v1683, %v2007
    %v2009 = vpop.f32.mrf.mxu0
    %v2010 = vpop.f32.mrf.mxu0
    %v2011 = vpop.f32.mrf.mxu0
    %2012 = vdwg.mxu0
    %2013 = vmatprep.subr.bf16.mxu0 0
    %2014 = vmatpush1.bf16.msra.mxu0 %v1900
    %2015 = vmatprep.subr.bf16.mxu0 0
    %2016 = vmatpush1.bf16.msra.mxu0 %v1899
    %2017 = vmatprep.subr.bf16.mxu0 0
    %2018 = vmatpush1.bf16.msra.mxu0 %v1898
    %2019 = vmatprep.subr.bf16.mxu0 0
    %2020 = vmatpush1.bf16.msra.mxu0 %v1897
    %2021 = vmatprep.subr.bf16.mxu0 0
    %2022 = vmatpush1.bf16.msra.mxu0 %v1896
    %2023 = vmatprep.subr.bf16.mxu0 0
    %2024 = vmatpush1.bf16.msra.mxu0 %v1895
    %2025 = vmatprep.subr.bf16.mxu0 0
    %2026 = vmatpush1.bf16.msra.mxu0 %v1894
    %2027 = vmatprep.subr.bf16.mxu0 0
    %2028 = vmatpush1.bf16.msra.mxu0 %v1893
    %2029 = vmatprep.subr.bf16.mxu0 0
    %2030 = vmatpush2.bf16.msra.mxu0 %v1908
    %2031 = vmatprep.subr.bf16.mxu0 0
    %2032 = vmatpush2.bf16.msra.mxu0 %v1907
    %2033 = vmatprep.subr.bf16.mxu0 0
    %2034 = vmatpush2.bf16.msra.mxu0 %v1906
    %2035 = vmatprep.subr.bf16.mxu0 0
    %2036 = vmatpush2.bf16.msra.mxu0 %v1905
    %2037 = vmatprep.subr.bf16.mxu0 0
    %2038 = vmatpush2.bf16.msra.mxu0 %v1904
    %2039 = vmatprep.subr.bf16.mxu0 0
    %2040 = vmatpush2.bf16.msra.mxu0 %v1903
    %2041 = vmatprep.subr.bf16.mxu0 0
    %2042 = vmatpush2.bf16.msra.mxu0 %v1902
    %2043 = vmatprep.subr.bf16.mxu0 0
    %2044 = vmatpush2.bf16.msra.mxu0 %v1901
    %2045 = vmatprep.mubr.bf16.mxu0 %v1579
    %2046 = vmatmul.mubr.bf16.gmra.mxu0 %v1578
    %v2047 = vpop.f32.mrf.mxu0
    %v2048 = vadd.f32 %v2008, %v2047
    %v2049 = vpop.f32.mrf.mxu0
    %v2050 = vpop.f32.mrf.mxu0
    %v2051 = vpop.f32.mrf.mxu0
    %2052 = vdwg.mxu0
    %2053 = vmatprep.subr.bf16.mxu0 0
    %2054 = vmatpush1.bf16.msra.mxu0 %v1916
    %2055 = vmatprep.subr.bf16.mxu0 0
    %2056 = vmatpush1.bf16.msra.mxu0 %v1915
    %2057 = vmatprep.subr.bf16.mxu0 0
    %2058 = vmatpush1.bf16.msra.mxu0 %v1914
    %2059 = vmatprep.subr.bf16.mxu0 0
    %2060 = vmatpush1.bf16.msra.mxu0 %v1913
    %2061 = vmatprep.subr.bf16.mxu0 0
    %2062 = vmatpush1.bf16.msra.mxu0 %v1912
    %2063 = vmatprep.subr.bf16.mxu0 0
    %2064 = vmatpush1.bf16.msra.mxu0 %v1911
    %2065 = vmatprep.subr.bf16.mxu0 0
    %2066 = vmatpush1.bf16.msra.mxu0 %v1910
    %2067 = vmatprep.subr.bf16.mxu0 0
    %2068 = vmatpush1.bf16.msra.mxu0 %v1909
    %2069 = vmatprep.subr.bf16.mxu0 0
    %2070 = vmatpush2.bf16.msra.mxu0 %v1924
    %2071 = vmatprep.subr.bf16.mxu0 0
    %2072 = vmatpush2.bf16.msra.mxu0 %v1923
    %2073 = vmatprep.subr.bf16.mxu0 0
    %2074 = vmatpush2.bf16.msra.mxu0 %v1922
    %2075 = vmatprep.subr.bf16.mxu0 0
    %2076 = vmatpush2.bf16.msra.mxu0 %v1921
    %2077 = vmatprep.subr.bf16.mxu0 0
    %2078 = vmatpush2.bf16.msra.mxu0 %v1920
    %2079 = vmatprep.subr.bf16.mxu0 0
    %2080 = vmatpush2.bf16.msra.mxu0 %v1919
    %2081 = vmatprep.subr.bf16.mxu0 0
    %2082 = vmatpush2.bf16.msra.mxu0 %v1918
    %2083 = vmatprep.subr.bf16.mxu0 0
    %2084 = vmatpush2.bf16.msra.mxu0 %v1917
    %2085 = vmatprep.mubr.bf16.mxu0 %v1581
    %2086 = vmatmul.mubr.bf16.gmra.mxu0 %v1580
    %v2087 = vpop.f32.mrf.mxu0
    %v2088 = vadd.f32 %v2048, %v2087
    %v2089 = vpop.f32.mrf.mxu0
    %v2090 = vpop.f32.mrf.mxu0
    %v2091 = vpop.f32.mrf.mxu0
    %2092 = vdwg.mxu0
    %v2093 = vmul.f32 %v2088, %v2088
    %v2094 = vsel %vm1477, %v2093, 0.0
    %2095 = vadd.xlane.f32.xlu0 %v2094
    %v2096 = vpop.xlane.xlu0 %2095
    %v2097 = vmax.f32 %v2096, 1e-24
    %v2098 = vrsqrt.pop %v2097
    %v2099 = vmul.f32 %v2088, %v2098
    %2100 = vst.msk [vmem:[#allocation5] sm:$0x3] %vm1477, %v2099
    // Predicated region
    $region30: #{text_head_forward.1} parent=1 // pred_check
      _
    $region31: #{text_head_forward.1} parent=1 // pred_check_branch
      %2102 = sbr.rel (0) target = $region33
    $region32: #{text_head_forward.1} parent=1 // pred_region
      _
    $region33: #{text_head_forward.1} parent=1 // pred_fallthru
      _
    // Predicated region
    $region34: #{text_head_forward.1} parent=1 // pred_check
      _
    $region35: #{text_head_forward.1} parent=1 // pred_check_branch
      %2104 = sbr.rel (0) target = $region37
    $region36: #{text_head_forward.1} parent=1 // pred_region
      %s2106 = ssub.s32 32, 32
      %2107 = vsyncadd [#allocation4], %s2106
      %s2109 = sshll.u32 [#allocation5], 4
      %s2110 = int_to_ptr.vmem [resolvable:$true] %s2109
      %2112 = dma.vmem_to_hbm [thread:$0]  %s2110, 32, %s7, [#allocation4]
    $region37: #{text_head_forward.1} parent=1 // pred_fallthru
      _
    // Predicated region
    $region38: #{text_head_forward.1} parent=1 // pred_check
      _
    $region39: #{text_head_forward.1} parent=1 // pred_check_branch
      %2114 = sbr.rel (0) target = $region41
    $region40: #{text_head_forward.1} parent=1 // pred_region
      _
    $region41: #{text_head_forward.1} parent=1 // pred_fallthru
      _
    // Predicated region
    $region42: #{text_head_forward.1} parent=1 // pred_check
      _
    $region43: #{text_head_forward.1} parent=1 // pred_check_branch
      %2116 = sbr.rel (0) target = $region45
    $region44: #{text_head_forward.1} parent=1 // pred_region
      %2117 = dma.done [#allocation4], 32
    $region45: #{text_head_forward.1} parent=1 // pred_fallthru
      _
    %2118 = vsyncpa [#allocation3], 1
    %2119 = vsyncpa [#allocation4], 1

</llo_original>
